<compile_context>
chip_gen: v6e
topology: v6e:2x2x1
jax: 0.10.0
libtpu: 0.0.40
codegen_flags: <defaults>
</compile_context>

<pallas_src>
import math
import random

import jax
import jax.numpy as jnp
from jax import lax
from jax.experimental import pallas as pl
from jax.experimental.pallas import tpu as pltpu


_VMEM = pl.BlockSpec(memory_space=pltpu.MemorySpace.VMEM)


# ------------------------------ fused kernel --------------------------------

def make_fused_kernel(T, B, D, H, num_layers, target_len, tf_flags, offsets, use_y):
    """Build the fused encoder+decoder kernel (all sizes / flags / offsets static)."""
    n_dec = 2 * num_layers
    H2, H3, H4, H6, H8 = 2 * H, 3 * H, 4 * H, 6 * H, 8 * H

    def sigmoid(z):
        # exact identity; tanh is a single EUP op (no divide / exp chain on the VPU)
        return 0.5 * jnp.tanh(0.5 * z) + 0.5

    def bidir_cell(gates, c2):
        # gates columns: [i_f, i_b, f_f, f_b, o_f, o_b, g_f, g_b], each width H
        s = sigmoid(gates[:, 0:H6])
        g = jnp.tanh(gates[:, H6:H8])
        i = s[:, 0:H2]
        f = s[:, H2:H4]
        o = s[:, H4:H6]
        c2 = f * c2 + i * g            # c2 layout [c_f | c_b]
        h2 = o * jnp.tanh(c2)          # h2 layout [h_f | h_b]
        return h2, c2

    def uni_cell(gates, c):
        # gates columns: [i, f, o, g], each width H
        s = sigmoid(gates[:, 0:H3])
        g = jnp.tanh(gates[:, H3:H4])
        i = s[:, 0:H]
        f = s[:, H:H2]
        o = s[:, H2:H3]
        c = f * c + i * g
        h = o * jnp.tanh(c)
        return h, c

    def kernel(*refs):
        if use_y:
            x_ref, y_ref, w_ref, out_ref = refs
        else:
            x_ref, w_ref, out_ref = refs
            y_ref = None

        x2d = x_ref[...]                                    # (T*B, D), time-major flat

        # ----------------- bidirectional LSTM encoder -----------------
        layer_in = x2d
        enc_h2, enc_c2 = [], []                             # per layer: (B, 2H) [fwd | bwd]
        for l in range(num_layers):
            off = offsets["enc"][l]
            d_in = D if l == 0 else H2
            wih_f = w_ref[off["wih_f"]:off["wih_f"] + d_in, :]   # (d_in, 8H), bwd cols zero
            wih_b = w_ref[off["wih_b"]:off["wih_b"] + d_in, :]   # (d_in, 8H), fwd cols zero
            b_all = w_ref[off["b"]:off["b"] + 1, :]              # (1, 8H)
            whh_bd = w_ref[off["whh"]:off["whh"] + H2, :]        # (2H, 8H) block-diagonal

            # hoisted input projections (outside the recurrence)
            xproj_f = jnp.dot(layer_in, wih_f, preferred_element_type=jnp.float32)
            xproj_b = jnp.dot(layer_in, wih_b,
                              preferred_element_type=jnp.float32) + b_all

            h2 = jnp.zeros((B, H2), jnp.float32)
            c2 = jnp.zeros((B, H2), jnp.float32)
            steps = [None] * T
            for t in range(T):                              # static unroll
                tb = T - 1 - t                              # backward dir time index
                x_gate = xproj_f[t * B:(t + 1) * B, :] + xproj_b[tb * B:(tb + 1) * B, :]
                gates = x_gate + jnp.dot(h2, whh_bd,
                                         preferred_element_type=jnp.float32)
                h2, c2 = bidir_cell(gates, c2)
                if num_layers > 1:
                    steps[t] = h2
            enc_h2.append(h2)
            enc_c2.append(c2)
            if l + 1 < num_layers:
                # layer output at time s = [h_f(s) | h_b(s)];
                # h_b(s) was produced at inner step T-1-s.
                layer_in = jnp.concatenate(
                    [jnp.concatenate([steps[t][:, 0:H], steps[T - 1 - t][:, H:H2]],
                                     axis=1) for t in range(T)],
                    axis=0)

        # ---------- (2*num_layers)-layer LSTM decoder + Linear(H, 1) ----------
        dec_weights = []
        for k in range(n_dec):
            d_in_k = D if k == 0 else H
            o = offsets["dec"][k]
            w_cat = w_ref[o["w"]:o["w"] + d_in_k + H, 0:H4]      # ([inp|h] rows, 4H)
            b_k = w_ref[o["b"]:o["b"] + 1, 0:H4]                 # (1, 4H)
            dec_weights.append((w_cat, b_k))
        lo = offsets["lin"]
        lin_w = w_ref[lo:lo + 1, 0:H]                            # (1, H)
        lin_b = w_ref[lo:lo + 1, H:H + 1]                        # (1, 1)
        lin_w_b = jnp.broadcast_to(lin_w, (B, H))                # hoisted broadcast

        # PyTorch hn/cn layout: [l0_fwd, l0_bwd, l1_fwd, l1_bwd, ...]
        h_dec, c_dec = [], []
        for l in range(num_layers):
            h_dec += [enc_h2[l][:, 0:H], enc_h2[l][:, H:H2]]
            c_dec += [enc_c2[l][:, 0:H], enc_c2[l][:, H:H2]]

        decoder_input = x2d[(T - 1) * B:T * B, :]                # x[:, -1, :]
        out_cols = lax.broadcasted_iota(jnp.int32, (B, target_len), 1)
        in_cols = lax.broadcasted_iota(jnp.int32, (B, D), 1)
        out_acc = jnp.zeros((B, target_len), jnp.float32)

        for t in range(target_len):                              # static unroll
            inp = decoder_input
            for k in range(n_dec):
                w_cat, b_k = dec_weights[k]
                lhs = jnp.concatenate([inp, h_dec[k]], axis=1)   # fused [inp | h] matmul
                gates = jnp.dot(lhs, w_cat,
                                preferred_element_type=jnp.float32) + b_k
                h_dec[k], c_dec[k] = uni_cell(gates, c_dec[k])
                inp = h_dec[k]
            # Linear(H, 1) as VPU mul + lane reduction (no N=1 MXU pass)
            out = jnp.sum(inp * lin_w_b, axis=1, keepdims=True) + lin_b   # (B, 1)
            out_acc = out_acc + jnp.where(out_cols == t, out, 0.0)

            # rebuild decoder_input (teacher-forcing decision is static per step)
            if tf_flags[t]:
                dec_out0 = y_ref[t * B:(t + 1) * B, 0:1]         # y[:, t, 0]
            else:
                dec_out0 = out
            sub0 = dec_out0
            sub1 = decoder_input[:, 0:1] - sub0
            sub2 = decoder_input[:, 1:2] - sub1
            decoder_input = (jnp.where(in_cols == 0, sub0, 0.0) +
                             jnp.where(in_cols == 1, sub1, 0.0) +
                             jnp.where(in_cols == 2, sub2, 0.0))  # cols >= 3 stay zero

        out_ref[...] = out_acc                                   # single lane-dense store

    return kernel


# ------------------------------ JAX wrapper ----------------------------------

def build_forward(offsets, *, T, B, D, H, num_layers, target_len, tf_flags):
    use_y = any(tf_flags)
    kernel = make_fused_kernel(T, B, D, H, num_layers, target_len, tf_flags,
                               offsets, use_y)
    n_in = 3 if use_y else 2
    call = pl.pallas_call(
        kernel,
        out_shape=jax.ShapeDtypeStruct((B, target_len), jnp.float32),
        in_specs=[_VMEM] * n_in,
        out_specs=_VMEM,
    )

    @jax.jit
    def forward(x, y, packed):
        x2d = jnp.transpose(x, (1, 0, 2)).reshape(T * B, D)      # time-major flat
        if use_y:
            y2d = jnp.transpose(y, (1, 0, 2)).reshape(target_len * B, D)
            out = call(x2d, y2d, packed)
        else:
            out = call(x2d, packed)                              # y never read: drop it
        return out[:, :, None]                                   # (B, target_len, 1)

    return forward


# --------------------------- weight packing -----------------------------------

def pack_weights(raw, D, H, num_layers):
    """Pack all weights into one (rows, 8H) f32 slab; gate columns pre-reordered."""
    H8 = 8 * H
    W = H8
    blocks = []
    offsets = {"enc": [], "dec": []}
    cursor = [0]

    def add_block(arr):
        r, c = arr.shape
        pad_r = (-r) % 8                                        # sublane-align row offsets
        block = jnp.zeros((r + pad_r, W), jnp.float32)
        block = block.at[:r, :c].set(arr)
        off = cursor[0]
        blocks.append(block)
        cursor[0] += r + pad_r
        return off

    def reorder_uni(w_t):
        # PyTorch col blocks [i, f, g, o] -> [i, f, o, g]
        return jnp.concatenate([w_t[:, 0:H], w_t[:, H:2 * H],
                                w_t[:, 3 * H:4 * H], w_t[:, 2 * H:3 * H]], axis=1)

    def embed_dir(w_t, direction):
        # (rows, 4H) [i,f,g,o] -> (rows, 8H) interleaved [i_f,i_b,f_f,f_b,o_f,o_b,g_f,g_b]
        rows = w_t.shape[0]
        out = jnp.zeros((rows, H8), jnp.float32)
        src = {"i": w_t[:, 0:H], "f": w_t[:, H:2 * H],
               "g": w_t[:, 2 * H:3 * H], "o": w_t[:, 3 * H:4 * H]}
        base = {"i": 0, "f": 2, "o": 4, "g": 6}
        d = 0 if direction == "f" else 1
        for name in ("i", "f", "o", "g"):
            c0 = (base[name] + d) * H
            out = out.at[:, c0:c0 + H].set(src[name])
        return out

    d_in = D
    for l in range(num_layers):
        rl = raw["enc"][l]
        wih_f_emb = embed_dir(rl["w_ih_f"].T, "f")               # (d_in, 8H)
        wih_b_emb = embed_dir(rl["w_ih_b"].T, "b")
        b_f = (rl["b_ih_f"] + rl["b_hh_f"]).reshape(1, 4 * H)
        b_b = (rl["b_ih_b"] + rl["b_hh_b"]).reshape(1, 4 * H)
        b_all = embed_dir(b_f, "f") + embed_dir(b_b, "b")        # (1, 8H)
        whh_bd = jnp.concatenate([embed_dir(rl["w_hh_f"].T, "f"),
                                  embed_dir(rl["w_hh_b"].T, "b")], axis=0)   # (2H, 8H)
        offsets["enc"].append({
            "wih_f": add_block(wih_f_emb),
            "wih_b": add_block(wih_b_emb),
            "b": add_block(b_all),
            "whh": add_block(whh_bd),
        })
        d_in = 2 * H
        del d_in  # (per-layer d_in recomputed in the kernel)

    d_in = D
    for k in range(2 * num_layers):
        rk = raw["dec"][k]
        w_ih = reorder_uni(rk["w_ih"].T)                         # (d_in, 4H)
        w_hh = reorder_uni(rk["w_hh"].T)                         # (H, 4H)
        b_k = reorder_uni((rk["b_ih"] + rk["b_hh"]).reshape(1, 4 * H))
        w_cat = jnp.concatenate([w_ih, w_hh], axis=0)            # (d_in + H, 4H)
        offsets["dec"].append({"w": add_block(w_cat), "b": add_block(b_k)})
        d_in = H

    lin_row = jnp.zeros((1, W), jnp.float32)
    lin_row = lin_row.at[0, 0:H].set(raw["lin_w"][0])
    lin_row = lin_row.at[0, H].set(raw["lin_b"][0])
    offsets["lin"] = add_block(lin_row)

    packed = jnp.concatenate(blocks, axis=0)
    return packed, offsets


# --------------------------- pure-JAX reference -------------------------------

def reference_forward(x, y, raw, target_len, tf_flags):
    B, T, D = x.shape
    H = raw["lin_w"].shape[1]

    def cell(gates, c_prev):
        i = jax.nn.sigmoid(gates[:, 0:H])
        f = jax.nn.sigmoid(gates[:, H:2 * H])
        g = jnp.tanh(gates[:, 2 * H:3 * H])
        o = jax.nn.sigmoid(gates[:, 3 * H:4 * H])
        c = f * c_prev + i * g
        return o * jnp.tanh(c), c

    layer_in = x
    hs, cs = [], []
    for rl in raw["enc"]:
        z = jnp.zeros((B, H), jnp.float32)
        h_f, c_f, h_b, c_b = z, z, z, z
        outs_f, outs_b = [None] * T, [None] * T
        for t in range(T):
            g_ = (layer_in[:, t, :] @ rl["w_ih_f"].T + rl["b_ih_f"] + rl["b_hh_f"]
                  + h_f @ rl["w_hh_f"].T)
            h_f, c_f = cell(g_, c_f)
            outs_f[t] = h_f
        for t in reversed(range(T)):
            g_ = (layer_in[:, t, :] @ rl["w_ih_b"].T + rl["b_ih_b"] + rl["b_hh_b"]
                  + h_b @ rl["w_hh_b"].T)
            h_b, c_b = cell(g_, c_b)
            outs_b[t] = h_b
        hs += [h_f, h_b]
        cs += [c_f, c_b]
        layer_in = jnp.stack(
            [jnp.concatenate([outs_f[t], outs_b[t]], axis=-1) for t in range(T)], axis=1)

    h_dec, c_dec = list(hs), list(cs)
    dec_in = x[:, -1, :]
    outs = []
    for t in range(target_len):
        inp = dec_in
        for k, rk in enumerate(raw["dec"]):
            g_ = (inp @ rk["w_ih"].T + rk["b_ih"] + rk["b_hh"]
                  + h_dec[k] @ rk["w_hh"].T)
            h_dec[k], c_dec[k] = cell(g_, c_dec[k])
            inp = h_dec[k]
        out = inp @ raw["lin_w"].T + raw["lin_b"]                # (B, 1)
        outs.append(out)
        d_out0 = y[:, t, 0:1] if tf_flags[t] else out
        sub0 = d_out0
        sub1 = dec_in[:, 0:1] - sub0
        sub2 = dec_in[:, 1:2] - sub1
        parts = [sub0, sub1, sub2]
        if D > 3:
            parts.append(jnp.zeros((B, D - 3), jnp.float32))
        dec_in = jnp.concatenate(parts, axis=1)
    return jnp.stack(outs, axis=1)                               # (B, target_len, 1)


# ------------------------------ param init ------------------------------------

def init_raw_params(key, input_size, hidden_size, num_layers):
    """PyTorch-style uniform(-1/sqrt(H), 1/sqrt(H)) init, PyTorch weight layout."""
    H = hidden_size
    bound = 1.0 / math.sqrt(H)
    key_box = [key]

    def uni(shape):
        key_box[0], sub = jax.random.split(key_box[0])
        return jax.random.uniform(sub, shape, jnp.float32, -bound, bound)

    enc = []
    d_in = input_size
    for _ in range(num_layers):
        enc.append({
            "w_ih_f": uni((4 * H, d_in)), "w_hh_f": uni((4 * H, H)),
            "b_ih_f": uni((4 * H,)), "b_hh_f": uni((4 * H,)),
            "w_ih_b": uni((4 * H, d_in)), "w_hh_b": uni((4 * H, H)),
            "b_ih_b": uni((4 * H,)), "b_hh_b": uni((4 * H,)),
        })
        d_in = 2 * H

    dec = []
    d_in = input_size
    for _ in range(2 * num_layers):
        dec.append({"w_ih": uni((4 * H, d_in)), "w_hh": uni((4 * H, H)),
                    "b_ih": uni((4 * H,)), "b_hh": uni((4 * H,))})
        d_in = H

    return {"enc": enc, "dec": dec, "lin_w": uni((1, H)), "lin_b": uni((1,))}


# ---------------------------------- main ---------------------------------------

if __name__ == "__main__":
    batch = 2
    input_size = 4          # must be >= 3 (decoder_sub uses columns 0..2)
    hidden_size = 32
    seq_len = 8
    num_layers = 1
    target_len = 4
    teacher_forcing_ratio = 0.0   # deterministic: never teacher-force

    key = jax.random.PRNGKey(0)
    k_x, k_y, k_p = jax.random.split(key, 3)
    x = jax.random.normal(k_x, (batch, seq_len, input_size), jnp.float32)
    y = jax.random.normal(k_y, (batch, target_len, input_size), jnp.float32)

    raw = init_raw_params(k_p, input_size, hidden_size, num_layers)
    packed, offsets = pack_weights(raw, input_size, hidden_size, num_layers)

    # host-side teacher-forcing decisions (mirrors random.random() < ratio in the spec)
    tf_flags = tuple(random.random() < teacher_forcing_ratio for _ in range(target_len))

    forward = build_forward(offsets, T=seq_len, B=batch, D=input_size, H=hidden_size,
                            num_layers=num_layers, target_len=target_len,
                            tf_flags=tf_flags)

    out = jax.block_until_ready(forward(x, y, packed))
    ref = jax.block_until_ready(reference_forward(x, y, raw, target_len, tf_flags))

    assert out.shape == (batch, target_len, 1), out.shape
    assert jnp.allclose(out, ref, atol=1e-4, rtol=1e-4), (out, ref)
    print("KERNEL_OK")
</pallas_src>

<mosaic_0001>
module attributes {stable_mosaic.version = 11 : i64} {
  func.func @kernel(%arg0: memref<16x4xf32, #tpu.memory_space<vmem>>, %arg1: memref<216x256xf32, #tpu.memory_space<vmem>>, %arg2: memref<2x4xf32, #tpu.memory_space<vmem>>) attributes {dimension_semantics = [], scalar_prefetch = 0 : i64, scratch_operands = 0 : i64, tpu.core_type = #tpu.core_type<tc>} {
    %c0 = arith.constant 0 : index
    %c0_0 = arith.constant 0 : index
    %0 = vector.load %arg0[%c0, %c0_0] : memref<16x4xf32, #tpu.memory_space<vmem>>, vector<16x4xf32>
    %c0_1 = arith.constant 0 : index
    %c0_2 = arith.constant 0 : index
    %1 = vector.load %arg1[%c0_1, %c0_2] : memref<216x256xf32, #tpu.memory_space<vmem>>, vector<4x256xf32>
    %c8 = arith.constant 8 : index
    %c0_3 = arith.constant 0 : index
    %2 = vector.load %arg1[%c8, %c0_3] : memref<216x256xf32, #tpu.memory_space<vmem>>, vector<4x256xf32>
    %c16 = arith.constant 16 : index
    %c0_4 = arith.constant 0 : index
    %3 = vector.load %arg1[%c16, %c0_4] : memref<216x256xf32, #tpu.memory_space<vmem>>, vector<1x256xf32>
    %c24 = arith.constant 24 : index
    %c0_5 = arith.constant 0 : index
    %4 = vector.load %arg1[%c24, %c0_5] : memref<216x256xf32, #tpu.memory_space<vmem>>, vector<64x256xf32>
    %cst = arith.constant dense<0.000000e+00> : vector<16x256xf32>
    %5 = tpu.matmul %0, %1, %cst {dimension_numbers = #tpu.dot_dimension_numbers<[1], [0], [0], [1], [0, 0, 1, 1], [], []>} : vector<16x4xf32>, vector<4x256xf32>, vector<16x256xf32> -> vector<16x256xf32>
    %cst_6 = arith.constant dense<0.000000e+00> : vector<16x256xf32>
    %6 = tpu.matmul %0, %2, %cst_6 {dimension_numbers = #tpu.dot_dimension_numbers<[1], [0], [0], [1], [0, 0, 1, 1], [], []>} : vector<16x4xf32>, vector<4x256xf32>, vector<16x256xf32> -> vector<16x256xf32>
    %7 = vector.broadcast %3 : vector<1x256xf32> to vector<16x256xf32>
    %8 = arith.addf %6, %7 : vector<16x256xf32>
    %cst_7 = arith.constant 0.000000e+00 : f32
    %9 = vector.broadcast %cst_7 : f32 to vector<2x64xf32>
    %cst_8 = arith.constant 0.000000e+00 : f32
    %10 = vector.broadcast %cst_8 : f32 to vector<2x64xf32>
    %11 = vector.extract_strided_slice %5 {offsets = [0, 0], sizes = [2, 256], strides = [1, 1]} : vector<16x256xf32> to vector<2x256xf32>
    %12 = vector.extract_strided_slice %8 {offsets = [14, 0], sizes = [2, 256], strides = [1, 1]} : vector<16x256xf32> to vector<2x256xf32>
    %13 = arith.addf %11, %12 : vector<2x256xf32>
    %cst_9 = arith.constant dense<0.000000e+00> : vector<2x256xf32>
    %14 = tpu.matmul %9, %4, %cst_9 {dimension_numbers = #tpu.dot_dimension_numbers<[1], [0], [0], [1], [0, 0, 1, 1], [], []>} : vector<2x64xf32>, vector<64x256xf32>, vector<2x256xf32> -> vector<2x256xf32>
    %15 = arith.addf %13, %14 : vector<2x256xf32>
    %16 = vector.extract_strided_slice %15 {offsets = [0, 0], sizes = [2, 192], strides = [1, 1]} : vector<2x256xf32> to vector<2x192xf32>
    %cst_10 = arith.constant 5.000000e-01 : f32
    %17 = vector.broadcast %cst_10 : f32 to vector<2x192xf32>
    %18 = arith.mulf %17, %16 : vector<2x192xf32>
    %19 = math.tanh %18 : vector<2x192xf32>
    %cst_11 = arith.constant 5.000000e-01 : f32
    %20 = vector.broadcast %cst_11 : f32 to vector<2x192xf32>
    %21 = arith.mulf %20, %19 : vector<2x192xf32>
    %cst_12 = arith.constant 5.000000e-01 : f32
    %22 = vector.broadcast %cst_12 : f32 to vector<2x192xf32>
    %23 = arith.addf %21, %22 : vector<2x192xf32>
    %24 = vector.extract_strided_slice %15 {offsets = [0, 192], sizes = [2, 64], strides = [1, 1]} : vector<2x256xf32> to vector<2x64xf32>
    %25 = math.tanh %24 : vector<2x64xf32>
    %26 = vector.extract_strided_slice %23 {offsets = [0, 0], sizes = [2, 64], strides = [1, 1]} : vector<2x192xf32> to vector<2x64xf32>
    %27 = vector.extract_strided_slice %23 {offsets = [0, 64], sizes = [2, 64], strides = [1, 1]} : vector<2x192xf32> to vector<2x64xf32>
    %28 = vector.extract_strided_slice %23 {offsets = [0, 128], sizes = [2, 64], strides = [1, 1]} : vector<2x192xf32> to vector<2x64xf32>
    %29 = arith.mulf %27, %10 : vector<2x64xf32>
    %30 = arith.mulf %26, %25 : vector<2x64xf32>
    %31 = arith.addf %29, %30 : vector<2x64xf32>
    %32 = math.tanh %31 : vector<2x64xf32>
    %33 = arith.mulf %28, %32 : vector<2x64xf32>
    %34 = vector.extract_strided_slice %5 {offsets = [2, 0], sizes = [2, 256], strides = [1, 1]} : vector<16x256xf32> to vector<2x256xf32>
    %35 = vector.extract_strided_slice %8 {offsets = [12, 0], sizes = [2, 256], strides = [1, 1]} : vector<16x256xf32> to vector<2x256xf32>
    %36 = arith.addf %34, %35 : vector<2x256xf32>
    %cst_13 = arith.constant dense<0.000000e+00> : vector<2x256xf32>
    %37 = tpu.matmul %33, %4, %cst_13 {dimension_numbers = #tpu.dot_dimension_numbers<[1], [0], [0], [1], [0, 0, 1, 1], [], []>} : vector<2x64xf32>, vector<64x256xf32>, vector<2x256xf32> -> vector<2x256xf32>
    %38 = arith.addf %36, %37 : vector<2x256xf32>
    %39 = vector.extract_strided_slice %38 {offsets = [0, 0], sizes = [2, 192], strides = [1, 1]} : vector<2x256xf32> to vector<2x192xf32>
    %cst_14 = arith.constant 5.000000e-01 : f32
    %40 = vector.broadcast %cst_14 : f32 to vector<2x192xf32>
    %41 = arith.mulf %40, %39 : vector<2x192xf32>
    %42 = math.tanh %41 : vector<2x192xf32>
    %cst_15 = arith.constant 5.000000e-01 : f32
    %43 = vector.broadcast %cst_15 : f32 to vector<2x192xf32>
    %44 = arith.mulf %43, %42 : vector<2x192xf32>
    %cst_16 = arith.constant 5.000000e-01 : f32
    %45 = vector.broadcast %cst_16 : f32 to vector<2x192xf32>
    %46 = arith.addf %44, %45 : vector<2x192xf32>
    %47 = vector.extract_strided_slice %38 {offsets = [0, 192], sizes = [2, 64], strides = [1, 1]} : vector<2x256xf32> to vector<2x64xf32>
    %48 = math.tanh %47 : vector<2x64xf32>
    %49 = vector.extract_strided_slice %46 {offsets = [0, 0], sizes = [2, 64], strides = [1, 1]} : vector<2x192xf32> to vector<2x64xf32>
    %50 = vector.extract_strided_slice %46 {offsets = [0, 64], sizes = [2, 64], strides = [1, 1]} : vector<2x192xf32> to vector<2x64xf32>
    %51 = vector.extract_strided_slice %46 {offsets = [0, 128], sizes = [2, 64], strides = [1, 1]} : vector<2x192xf32> to vector<2x64xf32>
    %52 = arith.mulf %50, %31 : vector<2x64xf32>
    %53 = arith.mulf %49, %48 : vector<2x64xf32>
    %54 = arith.addf %52, %53 : vector<2x64xf32>
    %55 = math.tanh %54 : vector<2x64xf32>
    %56 = arith.mulf %51, %55 : vector<2x64xf32>
    %57 = vector.extract_strided_slice %5 {offsets = [4, 0], sizes = [2, 256], strides = [1, 1]} : vector<16x256xf32> to vector<2x256xf32>
    %58 = vector.extract_strided_slice %8 {offsets = [10, 0], sizes = [2, 256], strides = [1, 1]} : vector<16x256xf32> to vector<2x256xf32>
    %59 = arith.addf %57, %58 : vector<2x256xf32>
    %cst_17 = arith.constant dense<0.000000e+00> : vector<2x256xf32>
    %60 = tpu.matmul %56, %4, %cst_17 {dimension_numbers = #tpu.dot_dimension_numbers<[1], [0], [0], [1], [0, 0, 1, 1], [], []>} : vector<2x64xf32>, vector<64x256xf32>, vector<2x256xf32> -> vector<2x256xf32>
    %61 = arith.addf %59, %60 : vector<2x256xf32>
    %62 = vector.extract_strided_slice %61 {offsets = [0, 0], sizes = [2, 192], strides = [1, 1]} : vector<2x256xf32> to vector<2x192xf32>
    %cst_18 = arith.constant 5.000000e-01 : f32
    %63 = vector.broadcast %cst_18 : f32 to vector<2x192xf32>
    %64 = arith.mulf %63, %62 : vector<2x192xf32>
    %65 = math.tanh %64 : vector<2x192xf32>
    %cst_19 = arith.constant 5.000000e-01 : f32
    %66 = vector.broadcast %cst_19 : f32 to vector<2x192xf32>
    %67 = arith.mulf %66, %65 : vector<2x192xf32>
    %cst_20 = arith.constant 5.000000e-01 : f32
    %68 = vector.broadcast %cst_20 : f32 to vector<2x192xf32>
    %69 = arith.addf %67, %68 : vector<2x192xf32>
    %70 = vector.extract_strided_slice %61 {offsets = [0, 192], sizes = [2, 64], strides = [1, 1]} : vector<2x256xf32> to vector<2x64xf32>
    %71 = math.tanh %70 : vector<2x64xf32>
    %72 = vector.extract_strided_slice %69 {offsets = [0, 0], sizes = [2, 64], strides = [1, 1]} : vector<2x192xf32> to vector<2x64xf32>
    %73 = vector.extract_strided_slice %69 {offsets = [0, 64], sizes = [2, 64], strides = [1, 1]} : vector<2x192xf32> to vector<2x64xf32>
    %74 = vector.extract_strided_slice %69 {offsets = [0, 128], sizes = [2, 64], strides = [1, 1]} : vector<2x192xf32> to vector<2x64xf32>
    %75 = arith.mulf %73, %54 : vector<2x64xf32>
    %76 = arith.mulf %72, %71 : vector<2x64xf32>
    %77 = arith.addf %75, %76 : vector<2x64xf32>
    %78 = math.tanh %77 : vector<2x64xf32>
    %79 = arith.mulf %74, %78 : vector<2x64xf32>
    %80 = vector.extract_strided_slice %5 {offsets = [6, 0], sizes = [2, 256], strides = [1, 1]} : vector<16x256xf32> to vector<2x256xf32>
    %81 = vector.extract_strided_slice %8 {offsets = [8, 0], sizes = [2, 256], strides = [1, 1]} : vector<16x256xf32> to vector<2x256xf32>
    %82 = arith.addf %80, %81 : vector<2x256xf32>
    %cst_21 = arith.constant dense<0.000000e+00> : vector<2x256xf32>
    %83 = tpu.matmul %79, %4, %cst_21 {dimension_numbers = #tpu.dot_dimension_numbers<[1], [0], [0], [1], [0, 0, 1, 1], [], []>} : vector<2x64xf32>, vector<64x256xf32>, vector<2x256xf32> -> vector<2x256xf32>
    %84 = arith.addf %82, %83 : vector<2x256xf32>
    %85 = vector.extract_strided_slice %84 {offsets = [0, 0], sizes = [2, 192], strides = [1, 1]} : vector<2x256xf32> to vector<2x192xf32>
    %cst_22 = arith.constant 5.000000e-01 : f32
    %86 = vector.broadcast %cst_22 : f32 to vector<2x192xf32>
    %87 = arith.mulf %86, %85 : vector<2x192xf32>
    %88 = math.tanh %87 : vector<2x192xf32>
    %cst_23 = arith.constant 5.000000e-01 : f32
    %89 = vector.broadcast %cst_23 : f32 to vector<2x192xf32>
    %90 = arith.mulf %89, %88 : vector<2x192xf32>
    %cst_24 = arith.constant 5.000000e-01 : f32
    %91 = vector.broadcast %cst_24 : f32 to vector<2x192xf32>
    %92 = arith.addf %90, %91 : vector<2x192xf32>
    %93 = vector.extract_strided_slice %84 {offsets = [0, 192], sizes = [2, 64], strides = [1, 1]} : vector<2x256xf32> to vector<2x64xf32>
    %94 = math.tanh %93 : vector<2x64xf32>
    %95 = vector.extract_strided_slice %92 {offsets = [0, 0], sizes = [2, 64], strides = [1, 1]} : vector<2x192xf32> to vector<2x64xf32>
    %96 = vector.extract_strided_slice %92 {offsets = [0, 64], sizes = [2, 64], strides = [1, 1]} : vector<2x192xf32> to vector<2x64xf32>
    %97 = vector.extract_strided_slice %92 {offsets = [0, 128], sizes = [2, 64], strides = [1, 1]} : vector<2x192xf32> to vector<2x64xf32>
    %98 = arith.mulf %96, %77 : vector<2x64xf32>
    %99 = arith.mulf %95, %94 : vector<2x64xf32>
    %100 = arith.addf %98, %99 : vector<2x64xf32>
    %101 = math.tanh %100 : vector<2x64xf32>
    %102 = arith.mulf %97, %101 : vector<2x64xf32>
    %103 = vector.extract_strided_slice %5 {offsets = [8, 0], sizes = [2, 256], strides = [1, 1]} : vector<16x256xf32> to vector<2x256xf32>
    %104 = vector.extract_strided_slice %8 {offsets = [6, 0], sizes = [2, 256], strides = [1, 1]} : vector<16x256xf32> to vector<2x256xf32>
    %105 = arith.addf %103, %104 : vector<2x256xf32>
    %cst_25 = arith.constant dense<0.000000e+00> : vector<2x256xf32>
    %106 = tpu.matmul %102, %4, %cst_25 {dimension_numbers = #tpu.dot_dimension_numbers<[1], [0], [0], [1], [0, 0, 1, 1], [], []>} : vector<2x64xf32>, vector<64x256xf32>, vector<2x256xf32> -> vector<2x256xf32>
    %107 = arith.addf %105, %106 : vector<2x256xf32>
    %108 = vector.extract_strided_slice %107 {offsets = [0, 0], sizes = [2, 192], strides = [1, 1]} : vector<2x256xf32> to vector<2x192xf32>
    %cst_26 = arith.constant 5.000000e-01 : f32
    %109 = vector.broadcast %cst_26 : f32 to vector<2x192xf32>
    %110 = arith.mulf %109, %108 : vector<2x192xf32>
    %111 = math.tanh %110 : vector<2x192xf32>
    %cst_27 = arith.constant 5.000000e-01 : f32
    %112 = vector.broadcast %cst_27 : f32 to vector<2x192xf32>
    %113 = arith.mulf %112, %111 : vector<2x192xf32>
    %cst_28 = arith.constant 5.000000e-01 : f32
    %114 = vector.broadcast %cst_28 : f32 to vector<2x192xf32>
    %115 = arith.addf %113, %114 : vector<2x192xf32>
    %116 = vector.extract_strided_slice %107 {offsets = [0, 192], sizes = [2, 64], strides = [1, 1]} : vector<2x256xf32> to vector<2x64xf32>
    %117 = math.tanh %116 : vector<2x64xf32>
    %118 = vector.extract_strided_slice %115 {offsets = [0, 0], sizes = [2, 64], strides = [1, 1]} : vector<2x192xf32> to vector<2x64xf32>
    %119 = vector.extract_strided_slice %115 {offsets = [0, 64], sizes = [2, 64], strides = [1, 1]} : vector<2x192xf32> to vector<2x64xf32>
    %120 = vector.extract_strided_slice %115 {offsets = [0, 128], sizes = [2, 64], strides = [1, 1]} : vector<2x192xf32> to vector<2x64xf32>
    %121 = arith.mulf %119, %100 : vector<2x64xf32>
    %122 = arith.mulf %118, %117 : vector<2x64xf32>
    %123 = arith.addf %121, %122 : vector<2x64xf32>
    %124 = math.tanh %123 : vector<2x64xf32>
    %125 = arith.mulf %120, %124 : vector<2x64xf32>
    %126 = vector.extract_strided_slice %5 {offsets = [10, 0], sizes = [2, 256], strides = [1, 1]} : vector<16x256xf32> to vector<2x256xf32>
    %127 = vector.extract_strided_slice %8 {offsets = [4, 0], sizes = [2, 256], strides = [1, 1]} : vector<16x256xf32> to vector<2x256xf32>
    %128 = arith.addf %126, %127 : vector<2x256xf32>
    %cst_29 = arith.constant dense<0.000000e+00> : vector<2x256xf32>
    %129 = tpu.matmul %125, %4, %cst_29 {dimension_numbers = #tpu.dot_dimension_numbers<[1], [0], [0], [1], [0, 0, 1, 1], [], []>} : vector<2x64xf32>, vector<64x256xf32>, vector<2x256xf32> -> vector<2x256xf32>
    %130 = arith.addf %128, %129 : vector<2x256xf32>
    %131 = vector.extract_strided_slice %130 {offsets = [0, 0], sizes = [2, 192], strides = [1, 1]} : vector<2x256xf32> to vector<2x192xf32>
    %cst_30 = arith.constant 5.000000e-01 : f32
    %132 = vector.broadcast %cst_30 : f32 to vector<2x192xf32>
    %133 = arith.mulf %132, %131 : vector<2x192xf32>
    %134 = math.tanh %133 : vector<2x192xf32>
    %cst_31 = arith.constant 5.000000e-01 : f32
    %135 = vector.broadcast %cst_31 : f32 to vector<2x192xf32>
    %136 = arith.mulf %135, %134 : vector<2x192xf32>
    %cst_32 = arith.constant 5.000000e-01 : f32
    %137 = vector.broadcast %cst_32 : f32 to vector<2x192xf32>
    %138 = arith.addf %136, %137 : vector<2x192xf32>
    %139 = vector.extract_strided_slice %130 {offsets = [0, 192], sizes = [2, 64], strides = [1, 1]} : vector<2x256xf32> to vector<2x64xf32>
    %140 = math.tanh %139 : vector<2x64xf32>
    %141 = vector.extract_strided_slice %138 {offsets = [0, 0], sizes = [2, 64], strides = [1, 1]} : vector<2x192xf32> to vector<2x64xf32>
    %142 = vector.extract_strided_slice %138 {offsets = [0, 64], sizes = [2, 64], strides = [1, 1]} : vector<2x192xf32> to vector<2x64xf32>
    %143 = vector.extract_strided_slice %138 {offsets = [0, 128], sizes = [2, 64], strides = [1, 1]} : vector<2x192xf32> to vector<2x64xf32>
    %144 = arith.mulf %142, %123 : vector<2x64xf32>
    %145 = arith.mulf %141, %140 : vector<2x64xf32>
    %146 = arith.addf %144, %145 : vector<2x64xf32>
    %147 = math.tanh %146 : vector<2x64xf32>
    %148 = arith.mulf %143, %147 : vector<2x64xf32>
    %149 = vector.extract_strided_slice %5 {offsets = [12, 0], sizes = [2, 256], strides = [1, 1]} : vector<16x256xf32> to vector<2x256xf32>
    %150 = vector.extract_strided_slice %8 {offsets = [2, 0], sizes = [2, 256], strides = [1, 1]} : vector<16x256xf32> to vector<2x256xf32>
    %151 = arith.addf %149, %150 : vector<2x256xf32>
    %cst_33 = arith.constant dense<0.000000e+00> : vector<2x256xf32>
    %152 = tpu.matmul %148, %4, %cst_33 {dimension_numbers = #tpu.dot_dimension_numbers<[1], [0], [0], [1], [0, 0, 1, 1], [], []>} : vector<2x64xf32>, vector<64x256xf32>, vector<2x256xf32> -> vector<2x256xf32>
    %153 = arith.addf %151, %152 : vector<2x256xf32>
    %154 = vector.extract_strided_slice %153 {offsets = [0, 0], sizes = [2, 192], strides = [1, 1]} : vector<2x256xf32> to vector<2x192xf32>
    %cst_34 = arith.constant 5.000000e-01 : f32
    %155 = vector.broadcast %cst_34 : f32 to vector<2x192xf32>
    %156 = arith.mulf %155, %154 : vector<2x192xf32>
    %157 = math.tanh %156 : vector<2x192xf32>
    %cst_35 = arith.constant 5.000000e-01 : f32
    %158 = vector.broadcast %cst_35 : f32 to vector<2x192xf32>
    %159 = arith.mulf %158, %157 : vector<2x192xf32>
    %cst_36 = arith.constant 5.000000e-01 : f32
    %160 = vector.broadcast %cst_36 : f32 to vector<2x192xf32>
    %161 = arith.addf %159, %160 : vector<2x192xf32>
    %162 = vector.extract_strided_slice %153 {offsets = [0, 192], sizes = [2, 64], strides = [1, 1]} : vector<2x256xf32> to vector<2x64xf32>
    %163 = math.tanh %162 : vector<2x64xf32>
    %164 = vector.extract_strided_slice %161 {offsets = [0, 0], sizes = [2, 64], strides = [1, 1]} : vector<2x192xf32> to vector<2x64xf32>
    %165 = vector.extract_strided_slice %161 {offsets = [0, 64], sizes = [2, 64], strides = [1, 1]} : vector<2x192xf32> to vector<2x64xf32>
    %166 = vector.extract_strided_slice %161 {offsets = [0, 128], sizes = [2, 64], strides = [1, 1]} : vector<2x192xf32> to vector<2x64xf32>
    %167 = arith.mulf %165, %146 : vector<2x64xf32>
    %168 = arith.mulf %164, %163 : vector<2x64xf32>
    %169 = arith.addf %167, %168 : vector<2x64xf32>
    %170 = math.tanh %169 : vector<2x64xf32>
    %171 = arith.mulf %166, %170 : vector<2x64xf32>
    %172 = vector.extract_strided_slice %5 {offsets = [14, 0], sizes = [2, 256], strides = [1, 1]} : vector<16x256xf32> to vector<2x256xf32>
    %173 = vector.extract_strided_slice %8 {offsets = [0, 0], sizes = [2, 256], strides = [1, 1]} : vector<16x256xf32> to vector<2x256xf32>
    %174 = arith.addf %172, %173 : vector<2x256xf32>
    %cst_37 = arith.constant dense<0.000000e+00> : vector<2x256xf32>
    %175 = tpu.matmul %171, %4, %cst_37 {dimension_numbers = #tpu.dot_dimension_numbers<[1], [0], [0], [1], [0, 0, 1, 1], [], []>} : vector<2x64xf32>, vector<64x256xf32>, vector<2x256xf32> -> vector<2x256xf32>
    %176 = arith.addf %174, %175 : vector<2x256xf32>
    %177 = vector.extract_strided_slice %176 {offsets = [0, 0], sizes = [2, 192], strides = [1, 1]} : vector<2x256xf32> to vector<2x192xf32>
    %cst_38 = arith.constant 5.000000e-01 : f32
    %178 = vector.broadcast %cst_38 : f32 to vector<2x192xf32>
    %179 = arith.mulf %178, %177 : vector<2x192xf32>
    %180 = math.tanh %179 : vector<2x192xf32>
    %cst_39 = arith.constant 5.000000e-01 : f32
    %181 = vector.broadcast %cst_39 : f32 to vector<2x192xf32>
    %182 = arith.mulf %181, %180 : vector<2x192xf32>
    %cst_40 = arith.constant 5.000000e-01 : f32
    %183 = vector.broadcast %cst_40 : f32 to vector<2x192xf32>
    %184 = arith.addf %182, %183 : vector<2x192xf32>
    %185 = vector.extract_strided_slice %176 {offsets = [0, 192], sizes = [2, 64], strides = [1, 1]} : vector<2x256xf32> to vector<2x64xf32>
    %186 = math.tanh %185 : vector<2x64xf32>
    %187 = vector.extract_strided_slice %184 {offsets = [0, 0], sizes = [2, 64], strides = [1, 1]} : vector<2x192xf32> to vector<2x64xf32>
    %188 = vector.extract_strided_slice %184 {offsets = [0, 64], sizes = [2, 64], strides = [1, 1]} : vector<2x192xf32> to vector<2x64xf32>
    %189 = vector.extract_strided_slice %184 {offsets = [0, 128], sizes = [2, 64], strides = [1, 1]} : vector<2x192xf32> to vector<2x64xf32>
    %190 = arith.mulf %188, %169 : vector<2x64xf32>
    %191 = arith.mulf %187, %186 : vector<2x64xf32>
    %192 = arith.addf %190, %191 : vector<2x64xf32>
    %193 = math.tanh %192 : vector<2x64xf32>
    %194 = arith.mulf %189, %193 : vector<2x64xf32>
    %c88 = arith.constant 88 : index
    %c0_41 = arith.constant 0 : index
    %195 = vector.load %arg1[%c88, %c0_41] : memref<216x256xf32, #tpu.memory_space<vmem>>, vector<36x128xf32>
    %c128 = arith.constant 128 : index
    %c0_42 = arith.constant 0 : index
    %196 = vector.load %arg1[%c128, %c0_42] : memref<216x256xf32, #tpu.memory_space<vmem>>, vector<1x128xf32>
    %c136 = arith.constant 136 : index
    %c0_43 = arith.constant 0 : index
    %197 = vector.load %arg1[%c136, %c0_43] : memref<216x256xf32, #tpu.memory_space<vmem>>, vector<64x128xf32>
    %c200 = arith.constant 200 : index
    %c0_44 = arith.constant 0 : index
    %198 = vector.load %arg1[%c200, %c0_44] : memref<216x256xf32, #tpu.memory_space<vmem>>, vector<1x128xf32>
    %c208 = arith.constant 208 : index
    %c0_45 = arith.constant 0 : index
    %199 = vector.load %arg1[%c208, %c0_45] : memref<216x256xf32, #tpu.memory_space<vmem>>, vector<1x32xf32>
    %c208_46 = arith.constant 208 : index
    %c32 = arith.constant 32 : index
    %200 = vector.load %arg1[%c208_46, %c32] : memref<216x256xf32, #tpu.memory_space<vmem>>, vector<1x1xf32>
    %201 = vector.shape_cast %199 : vector<1x32xf32> to vector<1x32xf32>
    %202 = vector.broadcast %201 : vector<1x32xf32> to vector<2x32xf32>
    %203 = vector.extract_strided_slice %194 {offsets = [0, 0], sizes = [2, 32], strides = [1, 1]} : vector<2x64xf32> to vector<2x32xf32>
    %204 = vector.extract_strided_slice %194 {offsets = [0, 32], sizes = [2, 32], strides = [1, 1]} : vector<2x64xf32> to vector<2x32xf32>
    %205 = vector.extract_strided_slice %192 {offsets = [0, 0], sizes = [2, 32], strides = [1, 1]} : vector<2x64xf32> to vector<2x32xf32>
    %206 = vector.extract_strided_slice %192 {offsets = [0, 32], sizes = [2, 32], strides = [1, 1]} : vector<2x64xf32> to vector<2x32xf32>
    %207 = vector.extract_strided_slice %0 {offsets = [14, 0], sizes = [2, 4], strides = [1, 1]} : vector<16x4xf32> to vector<2x4xf32>
    %208 = tpu.iota {dimensions = array<i32: 1>} : vector<2x4xi32>
    %209 = tpu.iota {dimensions = array<i32: 1>} : vector<2x4xi32>
    %cst_47 = arith.constant 0.000000e+00 : f32
    %210 = vector.broadcast %cst_47 : f32 to vector<2x4xf32>
    %211 = tpu.concatenate %207, %203 in 1 : vector<2x4xf32>, vector<2x32xf32> -> vector<2x36xf32>
    %cst_48 = arith.constant dense<0.000000e+00> : vector<2x128xf32>
    %212 = tpu.matmul %211, %195, %cst_48 {dimension_numbers = #tpu.dot_dimension_numbers<[1], [0], [0], [1], [0, 0, 1, 1], [], []>} : vector<2x36xf32>, vector<36x128xf32>, vector<2x128xf32> -> vector<2x128xf32>
    %213 = vector.broadcast %196 : vector<1x128xf32> to vector<2x128xf32>
    %214 = arith.addf %212, %213 : vector<2x128xf32>
    %215 = vector.extract_strided_slice %214 {offsets = [0, 0], sizes = [2, 96], strides = [1, 1]} : vector<2x128xf32> to vector<2x96xf32>
    %cst_49 = arith.constant 5.000000e-01 : f32
    %216 = vector.broadcast %cst_49 : f32 to vector<2x96xf32>
    %217 = arith.mulf %216, %215 : vector<2x96xf32>
    %218 = math.tanh %217 : vector<2x96xf32>
    %cst_50 = arith.constant 5.000000e-01 : f32
    %219 = vector.broadcast %cst_50 : f32 to vector<2x96xf32>
    %220 = arith.mulf %219, %218 : vector<2x96xf32>
    %cst_51 = arith.constant 5.000000e-01 : f32
    %221 = vector.broadcast %cst_51 : f32 to vector<2x96xf32>
    %222 = arith.addf %220, %221 : vector<2x96xf32>
    %223 = vector.extract_strided_slice %214 {offsets = [0, 96], sizes = [2, 32], strides = [1, 1]} : vector<2x128xf32> to vector<2x32xf32>
    %224 = math.tanh %223 : vector<2x32xf32>
    %225 = vector.extract_strided_slice %222 {offsets = [0, 0], sizes = [2, 32], strides = [1, 1]} : vector<2x96xf32> to vector<2x32xf32>
    %226 = vector.extract_strided_slice %222 {offsets = [0, 32], sizes = [2, 32], strides = [1, 1]} : vector<2x96xf32> to vector<2x32xf32>
    %227 = vector.extract_strided_slice %222 {offsets = [0, 64], sizes = [2, 32], strides = [1, 1]} : vector<2x96xf32> to vector<2x32xf32>
    %228 = arith.mulf %226, %205 : vector<2x32xf32>
    %229 = arith.mulf %225, %224 : vector<2x32xf32>
    %230 = arith.addf %228, %229 : vector<2x32xf32>
    %231 = math.tanh %230 : vector<2x32xf32>
    %232 = arith.mulf %227, %231 : vector<2x32xf32>
    %233 = tpu.concatenate %232, %204 in 1 : vector<2x32xf32>, vector<2x32xf32> -> vector<2x64xf32>
    %cst_52 = arith.constant dense<0.000000e+00> : vector<2x128xf32>
    %234 = tpu.matmul %233, %197, %cst_52 {dimension_numbers = #tpu.dot_dimension_numbers<[1], [0], [0], [1], [0, 0, 1, 1], [], []>} : vector<2x64xf32>, vector<64x128xf32>, vector<2x128xf32> -> vector<2x128xf32>
    %235 = vector.broadcast %198 : vector<1x128xf32> to vector<2x128xf32>
    %236 = arith.addf %234, %235 : vector<2x128xf32>
    %237 = vector.extract_strided_slice %236 {offsets = [0, 0], sizes = [2, 96], strides = [1, 1]} : vector<2x128xf32> to vector<2x96xf32>
    %cst_53 = arith.constant 5.000000e-01 : f32
    %238 = vector.broadcast %cst_53 : f32 to vector<2x96xf32>
    %239 = arith.mulf %238, %237 : vector<2x96xf32>
    %240 = math.tanh %239 : vector<2x96xf32>
    %cst_54 = arith.constant 5.000000e-01 : f32
    %241 = vector.broadcast %cst_54 : f32 to vector<2x96xf32>
    %242 = arith.mulf %241, %240 : vector<2x96xf32>
    %cst_55 = arith.constant 5.000000e-01 : f32
    %243 = vector.broadcast %cst_55 : f32 to vector<2x96xf32>
    %244 = arith.addf %242, %243 : vector<2x96xf32>
    %245 = vector.extract_strided_slice %236 {offsets = [0, 96], sizes = [2, 32], strides = [1, 1]} : vector<2x128xf32> to vector<2x32xf32>
    %246 = math.tanh %245 : vector<2x32xf32>
    %247 = vector.extract_strided_slice %244 {offsets = [0, 0], sizes = [2, 32], strides = [1, 1]} : vector<2x96xf32> to vector<2x32xf32>
    %248 = vector.extract_strided_slice %244 {offsets = [0, 32], sizes = [2, 32], strides = [1, 1]} : vector<2x96xf32> to vector<2x32xf32>
    %249 = vector.extract_strided_slice %244 {offsets = [0, 64], sizes = [2, 32], strides = [1, 1]} : vector<2x96xf32> to vector<2x32xf32>
    %250 = arith.mulf %248, %206 : vector<2x32xf32>
    %251 = arith.mulf %247, %246 : vector<2x32xf32>
    %252 = arith.addf %250, %251 : vector<2x32xf32>
    %253 = math.tanh %252 : vector<2x32xf32>
    %254 = arith.mulf %249, %253 : vector<2x32xf32>
    %255 = arith.mulf %254, %202 : vector<2x32xf32>
    %cst_56 = arith.constant dense<0.000000e+00> : vector<2xf32>
    %256 = vector.multi_reduction <add>, %255, %cst_56 [1] : vector<2x32xf32> to vector<2xf32>
    %257 = vector.shape_cast %256 : vector<2xf32> to vector<2x1xf32>
    %258 = vector.broadcast %200 : vector<1x1xf32> to vector<2x1xf32>
    %259 = arith.addf %257, %258 : vector<2x1xf32>
    %c0_i32 = arith.constant 0 : i32
    %260 = vector.broadcast %c0_i32 : i32 to vector<2x4xi32>
    %261 = arith.cmpi eq, %208, %260 : vector<2x4xi32>
    %cst_57 = arith.constant 0.000000e+00 : f32
    %262 = vector.shape_cast %259 : vector<2x1xf32> to vector<2x1xf32>
    %263 = vector.broadcast %262 : vector<2x1xf32> to vector<2x4xf32>
    %264 = vector.broadcast %cst_57 : f32 to vector<2x4xf32>
    %265 = arith.select %261, %263, %264 : vector<2x4xi1>, vector<2x4xf32>
    %266 = arith.addf %210, %265 : vector<2x4xf32>
    %267 = vector.extract_strided_slice %207 {offsets = [0, 0], sizes = [2, 1], strides = [1, 1]} : vector<2x4xf32> to vector<2x1xf32>
    %268 = arith.subf %267, %259 : vector<2x1xf32>
    %269 = vector.extract_strided_slice %207 {offsets = [0, 1], sizes = [2, 1], strides = [1, 1]} : vector<2x4xf32> to vector<2x1xf32>
    %270 = arith.subf %269, %268 : vector<2x1xf32>
    %c0_i32_58 = arith.constant 0 : i32
    %271 = vector.broadcast %c0_i32_58 : i32 to vector<2x4xi32>
    %272 = arith.cmpi eq, %209, %271 : vector<2x4xi32>
    %cst_59 = arith.constant 0.000000e+00 : f32
    %273 = vector.shape_cast %259 : vector<2x1xf32> to vector<2x1xf32>
    %274 = vector.broadcast %273 : vector<2x1xf32> to vector<2x4xf32>
    %275 = vector.broadcast %cst_59 : f32 to vector<2x4xf32>
    %276 = arith.select %272, %274, %275 : vector<2x4xi1>, vector<2x4xf32>
    %c1_i32 = arith.constant 1 : i32
    %277 = vector.broadcast %c1_i32 : i32 to vector<2x4xi32>
    %278 = arith.cmpi eq, %209, %277 : vector<2x4xi32>
    %cst_60 = arith.constant 0.000000e+00 : f32
    %279 = vector.shape_cast %268 : vector<2x1xf32> to vector<2x1xf32>
    %280 = vector.broadcast %279 : vector<2x1xf32> to vector<2x4xf32>
    %281 = vector.broadcast %cst_60 : f32 to vector<2x4xf32>
    %282 = arith.select %278, %280, %281 : vector<2x4xi1>, vector<2x4xf32>
    %283 = arith.addf %276, %282 : vector<2x4xf32>
    %c2_i32 = arith.constant 2 : i32
    %284 = vector.broadcast %c2_i32 : i32 to vector<2x4xi32>
    %285 = arith.cmpi eq, %209, %284 : vector<2x4xi32>
    %cst_61 = arith.constant 0.000000e+00 : f32
    %286 = vector.shape_cast %270 : vector<2x1xf32> to vector<2x1xf32>
    %287 = vector.broadcast %286 : vector<2x1xf32> to vector<2x4xf32>
    %288 = vector.broadcast %cst_61 : f32 to vector<2x4xf32>
    %289 = arith.select %285, %287, %288 : vector<2x4xi1>, vector<2x4xf32>
    %290 = arith.addf %283, %289 : vector<2x4xf32>
    %291 = tpu.concatenate %290, %232 in 1 : vector<2x4xf32>, vector<2x32xf32> -> vector<2x36xf32>
    %cst_62 = arith.constant dense<0.000000e+00> : vector<2x128xf32>
    %292 = tpu.matmul %291, %195, %cst_62 {dimension_numbers = #tpu.dot_dimension_numbers<[1], [0], [0], [1], [0, 0, 1, 1], [], []>} : vector<2x36xf32>, vector<36x128xf32>, vector<2x128xf32> -> vector<2x128xf32>
    %293 = vector.broadcast %196 : vector<1x128xf32> to vector<2x128xf32>
    %294 = arith.addf %292, %293 : vector<2x128xf32>
    %295 = vector.extract_strided_slice %294 {offsets = [0, 0], sizes = [2, 96], strides = [1, 1]} : vector<2x128xf32> to vector<2x96xf32>
    %cst_63 = arith.constant 5.000000e-01 : f32
    %296 = vector.broadcast %cst_63 : f32 to vector<2x96xf32>
    %297 = arith.mulf %296, %295 : vector<2x96xf32>
    %298 = math.tanh %297 : vector<2x96xf32>
    %cst_64 = arith.constant 5.000000e-01 : f32
    %299 = vector.broadcast %cst_64 : f32 to vector<2x96xf32>
    %300 = arith.mulf %299, %298 : vector<2x96xf32>
    %cst_65 = arith.constant 5.000000e-01 : f32
    %301 = vector.broadcast %cst_65 : f32 to vector<2x96xf32>
    %302 = arith.addf %300, %301 : vector<2x96xf32>
    %303 = vector.extract_strided_slice %294 {offsets = [0, 96], sizes = [2, 32], strides = [1, 1]} : vector<2x128xf32> to vector<2x32xf32>
    %304 = math.tanh %303 : vector<2x32xf32>
    %305 = vector.extract_strided_slice %302 {offsets = [0, 0], sizes = [2, 32], strides = [1, 1]} : vector<2x96xf32> to vector<2x32xf32>
    %306 = vector.extract_strided_slice %302 {offsets = [0, 32], sizes = [2, 32], strides = [1, 1]} : vector<2x96xf32> to vector<2x32xf32>
    %307 = vector.extract_strided_slice %302 {offsets = [0, 64], sizes = [2, 32], strides = [1, 1]} : vector<2x96xf32> to vector<2x32xf32>
    %308 = arith.mulf %306, %230 : vector<2x32xf32>
    %309 = arith.mulf %305, %304 : vector<2x32xf32>
    %310 = arith.addf %308, %309 : vector<2x32xf32>
    %311 = math.tanh %310 : vector<2x32xf32>
    %312 = arith.mulf %307, %311 : vector<2x32xf32>
    %313 = tpu.concatenate %312, %254 in 1 : vector<2x32xf32>, vector<2x32xf32> -> vector<2x64xf32>
    %cst_66 = arith.constant dense<0.000000e+00> : vector<2x128xf32>
    %314 = tpu.matmul %313, %197, %cst_66 {dimension_numbers = #tpu.dot_dimension_numbers<[1], [0], [0], [1], [0, 0, 1, 1], [], []>} : vector<2x64xf32>, vector<64x128xf32>, vector<2x128xf32> -> vector<2x128xf32>
    %315 = vector.broadcast %198 : vector<1x128xf32> to vector<2x128xf32>
    %316 = arith.addf %314, %315 : vector<2x128xf32>
    %317 = vector.extract_strided_slice %316 {offsets = [0, 0], sizes = [2, 96], strides = [1, 1]} : vector<2x128xf32> to vector<2x96xf32>
    %cst_67 = arith.constant 5.000000e-01 : f32
    %318 = vector.broadcast %cst_67 : f32 to vector<2x96xf32>
    %319 = arith.mulf %318, %317 : vector<2x96xf32>
    %320 = math.tanh %319 : vector<2x96xf32>
    %cst_68 = arith.constant 5.000000e-01 : f32
    %321 = vector.broadcast %cst_68 : f32 to vector<2x96xf32>
    %322 = arith.mulf %321, %320 : vector<2x96xf32>
    %cst_69 = arith.constant 5.000000e-01 : f32
    %323 = vector.broadcast %cst_69 : f32 to vector<2x96xf32>
    %324 = arith.addf %322, %323 : vector<2x96xf32>
    %325 = vector.extract_strided_slice %316 {offsets = [0, 96], sizes = [2, 32], strides = [1, 1]} : vector<2x128xf32> to vector<2x32xf32>
    %326 = math.tanh %325 : vector<2x32xf32>
    %327 = vector.extract_strided_slice %324 {offsets = [0, 0], sizes = [2, 32], strides = [1, 1]} : vector<2x96xf32> to vector<2x32xf32>
    %328 = vector.extract_strided_slice %324 {offsets = [0, 32], sizes = [2, 32], strides = [1, 1]} : vector<2x96xf32> to vector<2x32xf32>
    %329 = vector.extract_strided_slice %324 {offsets = [0, 64], sizes = [2, 32], strides = [1, 1]} : vector<2x96xf32> to vector<2x32xf32>
    %330 = arith.mulf %328, %252 : vector<2x32xf32>
    %331 = arith.mulf %327, %326 : vector<2x32xf32>
    %332 = arith.addf %330, %331 : vector<2x32xf32>
    %333 = math.tanh %332 : vector<2x32xf32>
    %334 = arith.mulf %329, %333 : vector<2x32xf32>
    %335 = arith.mulf %334, %202 : vector<2x32xf32>
    %cst_70 = arith.constant dense<0.000000e+00> : vector<2xf32>
    %336 = vector.multi_reduction <add>, %335, %cst_70 [1] : vector<2x32xf32> to vector<2xf32>
    %337 = vector.shape_cast %336 : vector<2xf32> to vector<2x1xf32>
    %338 = vector.broadcast %200 : vector<1x1xf32> to vector<2x1xf32>
    %339 = arith.addf %337, %338 : vector<2x1xf32>
    %c1_i32_71 = arith.constant 1 : i32
    %340 = vector.broadcast %c1_i32_71 : i32 to vector<2x4xi32>
    %341 = arith.cmpi eq, %208, %340 : vector<2x4xi32>
    %cst_72 = arith.constant 0.000000e+00 : f32
    %342 = vector.shape_cast %339 : vector<2x1xf32> to vector<2x1xf32>
    %343 = vector.broadcast %342 : vector<2x1xf32> to vector<2x4xf32>
    %344 = vector.broadcast %cst_72 : f32 to vector<2x4xf32>
    %345 = arith.select %341, %343, %344 : vector<2x4xi1>, vector<2x4xf32>
    %346 = arith.addf %266, %345 : vector<2x4xf32>
    %347 = vector.extract_strided_slice %290 {offsets = [0, 0], sizes = [2, 1], strides = [1, 1]} : vector<2x4xf32> to vector<2x1xf32>
    %348 = arith.subf %347, %339 : vector<2x1xf32>
    %349 = vector.extract_strided_slice %290 {offsets = [0, 1], sizes = [2, 1], strides = [1, 1]} : vector<2x4xf32> to vector<2x1xf32>
    %350 = arith.subf %349, %348 : vector<2x1xf32>
    %c0_i32_73 = arith.constant 0 : i32
    %351 = vector.broadcast %c0_i32_73 : i32 to vector<2x4xi32>
    %352 = arith.cmpi eq, %209, %351 : vector<2x4xi32>
    %cst_74 = arith.constant 0.000000e+00 : f32
    %353 = vector.shape_cast %339 : vector<2x1xf32> to vector<2x1xf32>
    %354 = vector.broadcast %353 : vector<2x1xf32> to vector<2x4xf32>
    %355 = vector.broadcast %cst_74 : f32 to vector<2x4xf32>
    %356 = arith.select %352, %354, %355 : vector<2x4xi1>, vector<2x4xf32>
    %c1_i32_75 = arith.constant 1 : i32
    %357 = vector.broadcast %c1_i32_75 : i32 to vector<2x4xi32>
    %358 = arith.cmpi eq, %209, %357 : vector<2x4xi32>
    %cst_76 = arith.constant 0.000000e+00 : f32
    %359 = vector.shape_cast %348 : vector<2x1xf32> to vector<2x1xf32>
    %360 = vector.broadcast %359 : vector<2x1xf32> to vector<2x4xf32>
    %361 = vector.broadcast %cst_76 : f32 to vector<2x4xf32>
    %362 = arith.select %358, %360, %361 : vector<2x4xi1>, vector<2x4xf32>
    %363 = arith.addf %356, %362 : vector<2x4xf32>
    %c2_i32_77 = arith.constant 2 : i32
    %364 = vector.broadcast %c2_i32_77 : i32 to vector<2x4xi32>
    %365 = arith.cmpi eq, %209, %364 : vector<2x4xi32>
    %cst_78 = arith.constant 0.000000e+00 : f32
    %366 = vector.shape_cast %350 : vector<2x1xf32> to vector<2x1xf32>
    %367 = vector.broadcast %366 : vector<2x1xf32> to vector<2x4xf32>
    %368 = vector.broadcast %cst_78 : f32 to vector<2x4xf32>
    %369 = arith.select %365, %367, %368 : vector<2x4xi1>, vector<2x4xf32>
    %370 = arith.addf %363, %369 : vector<2x4xf32>
    %371 = tpu.concatenate %370, %312 in 1 : vector<2x4xf32>, vector<2x32xf32> -> vector<2x36xf32>
    %cst_79 = arith.constant dense<0.000000e+00> : vector<2x128xf32>
    %372 = tpu.matmul %371, %195, %cst_79 {dimension_numbers = #tpu.dot_dimension_numbers<[1], [0], [0], [1], [0, 0, 1, 1], [], []>} : vector<2x36xf32>, vector<36x128xf32>, vector<2x128xf32> -> vector<2x128xf32>
    %373 = vector.broadcast %196 : vector<1x128xf32> to vector<2x128xf32>
    %374 = arith.addf %372, %373 : vector<2x128xf32>
    %375 = vector.extract_strided_slice %374 {offsets = [0, 0], sizes = [2, 96], strides = [1, 1]} : vector<2x128xf32> to vector<2x96xf32>
    %cst_80 = arith.constant 5.000000e-01 : f32
    %376 = vector.broadcast %cst_80 : f32 to vector<2x96xf32>
    %377 = arith.mulf %376, %375 : vector<2x96xf32>
    %378 = math.tanh %377 : vector<2x96xf32>
    %cst_81 = arith.constant 5.000000e-01 : f32
    %379 = vector.broadcast %cst_81 : f32 to vector<2x96xf32>
    %380 = arith.mulf %379, %378 : vector<2x96xf32>
    %cst_82 = arith.constant 5.000000e-01 : f32
    %381 = vector.broadcast %cst_82 : f32 to vector<2x96xf32>
    %382 = arith.addf %380, %381 : vector<2x96xf32>
    %383 = vector.extract_strided_slice %374 {offsets = [0, 96], sizes = [2, 32], strides = [1, 1]} : vector<2x128xf32> to vector<2x32xf32>
    %384 = math.tanh %383 : vector<2x32xf32>
    %385 = vector.extract_strided_slice %382 {offsets = [0, 0], sizes = [2, 32], strides = [1, 1]} : vector<2x96xf32> to vector<2x32xf32>
    %386 = vector.extract_strided_slice %382 {offsets = [0, 32], sizes = [2, 32], strides = [1, 1]} : vector<2x96xf32> to vector<2x32xf32>
    %387 = vector.extract_strided_slice %382 {offsets = [0, 64], sizes = [2, 32], strides = [1, 1]} : vector<2x96xf32> to vector<2x32xf32>
    %388 = arith.mulf %386, %310 : vector<2x32xf32>
    %389 = arith.mulf %385, %384 : vector<2x32xf32>
    %390 = arith.addf %388, %389 : vector<2x32xf32>
    %391 = math.tanh %390 : vector<2x32xf32>
    %392 = arith.mulf %387, %391 : vector<2x32xf32>
    %393 = tpu.concatenate %392, %334 in 1 : vector<2x32xf32>, vector<2x32xf32> -> vector<2x64xf32>
    %cst_83 = arith.constant dense<0.000000e+00> : vector<2x128xf32>
    %394 = tpu.matmul %393, %197, %cst_83 {dimension_numbers = #tpu.dot_dimension_numbers<[1], [0], [0], [1], [0, 0, 1, 1], [], []>} : vector<2x64xf32>, vector<64x128xf32>, vector<2x128xf32> -> vector<2x128xf32>
    %395 = vector.broadcast %198 : vector<1x128xf32> to vector<2x128xf32>
    %396 = arith.addf %394, %395 : vector<2x128xf32>
    %397 = vector.extract_strided_slice %396 {offsets = [0, 0], sizes = [2, 96], strides = [1, 1]} : vector<2x128xf32> to vector<2x96xf32>
    %cst_84 = arith.constant 5.000000e-01 : f32
    %398 = vector.broadcast %cst_84 : f32 to vector<2x96xf32>
    %399 = arith.mulf %398, %397 : vector<2x96xf32>
    %400 = math.tanh %399 : vector<2x96xf32>
    %cst_85 = arith.constant 5.000000e-01 : f32
    %401 = vector.broadcast %cst_85 : f32 to vector<2x96xf32>
    %402 = arith.mulf %401, %400 : vector<2x96xf32>
    %cst_86 = arith.constant 5.000000e-01 : f32
    %403 = vector.broadcast %cst_86 : f32 to vector<2x96xf32>
    %404 = arith.addf %402, %403 : vector<2x96xf32>
    %405 = vector.extract_strided_slice %396 {offsets = [0, 96], sizes = [2, 32], strides = [1, 1]} : vector<2x128xf32> to vector<2x32xf32>
    %406 = math.tanh %405 : vector<2x32xf32>
    %407 = vector.extract_strided_slice %404 {offsets = [0, 0], sizes = [2, 32], strides = [1, 1]} : vector<2x96xf32> to vector<2x32xf32>
    %408 = vector.extract_strided_slice %404 {offsets = [0, 32], sizes = [2, 32], strides = [1, 1]} : vector<2x96xf32> to vector<2x32xf32>
    %409 = vector.extract_strided_slice %404 {offsets = [0, 64], sizes = [2, 32], strides = [1, 1]} : vector<2x96xf32> to vector<2x32xf32>
    %410 = arith.mulf %408, %332 : vector<2x32xf32>
    %411 = arith.mulf %407, %406 : vector<2x32xf32>
    %412 = arith.addf %410, %411 : vector<2x32xf32>
    %413 = math.tanh %412 : vector<2x32xf32>
    %414 = arith.mulf %409, %413 : vector<2x32xf32>
    %415 = arith.mulf %414, %202 : vector<2x32xf32>
    %cst_87 = arith.constant dense<0.000000e+00> : vector<2xf32>
    %416 = vector.multi_reduction <add>, %415, %cst_87 [1] : vector<2x32xf32> to vector<2xf32>
    %417 = vector.shape_cast %416 : vector<2xf32> to vector<2x1xf32>
    %418 = vector.broadcast %200 : vector<1x1xf32> to vector<2x1xf32>
    %419 = arith.addf %417, %418 : vector<2x1xf32>
    %c2_i32_88 = arith.constant 2 : i32
    %420 = vector.broadcast %c2_i32_88 : i32 to vector<2x4xi32>
    %421 = arith.cmpi eq, %208, %420 : vector<2x4xi32>
    %cst_89 = arith.constant 0.000000e+00 : f32
    %422 = vector.shape_cast %419 : vector<2x1xf32> to vector<2x1xf32>
    %423 = vector.broadcast %422 : vector<2x1xf32> to vector<2x4xf32>
    %424 = vector.broadcast %cst_89 : f32 to vector<2x4xf32>
    %425 = arith.select %421, %423, %424 : vector<2x4xi1>, vector<2x4xf32>
    %426 = arith.addf %346, %425 : vector<2x4xf32>
    %427 = vector.extract_strided_slice %370 {offsets = [0, 0], sizes = [2, 1], strides = [1, 1]} : vector<2x4xf32> to vector<2x1xf32>
    %428 = arith.subf %427, %419 : vector<2x1xf32>
    %429 = vector.extract_strided_slice %370 {offsets = [0, 1], sizes = [2, 1], strides = [1, 1]} : vector<2x4xf32> to vector<2x1xf32>
    %430 = arith.subf %429, %428 : vector<2x1xf32>
    %c0_i32_90 = arith.constant 0 : i32
    %431 = vector.broadcast %c0_i32_90 : i32 to vector<2x4xi32>
    %432 = arith.cmpi eq, %209, %431 : vector<2x4xi32>
    %cst_91 = arith.constant 0.000000e+00 : f32
    %433 = vector.shape_cast %419 : vector<2x1xf32> to vector<2x1xf32>
    %434 = vector.broadcast %433 : vector<2x1xf32> to vector<2x4xf32>
    %435 = vector.broadcast %cst_91 : f32 to vector<2x4xf32>
    %436 = arith.select %432, %434, %435 : vector<2x4xi1>, vector<2x4xf32>
    %c1_i32_92 = arith.constant 1 : i32
    %437 = vector.broadcast %c1_i32_92 : i32 to vector<2x4xi32>
    %438 = arith.cmpi eq, %209, %437 : vector<2x4xi32>
    %cst_93 = arith.constant 0.000000e+00 : f32
    %439 = vector.shape_cast %428 : vector<2x1xf32> to vector<2x1xf32>
    %440 = vector.broadcast %439 : vector<2x1xf32> to vector<2x4xf32>
    %441 = vector.broadcast %cst_93 : f32 to vector<2x4xf32>
    %442 = arith.select %438, %440, %441 : vector<2x4xi1>, vector<2x4xf32>
    %443 = arith.addf %436, %442 : vector<2x4xf32>
    %c2_i32_94 = arith.constant 2 : i32
    %444 = vector.broadcast %c2_i32_94 : i32 to vector<2x4xi32>
    %445 = arith.cmpi eq, %209, %444 : vector<2x4xi32>
    %cst_95 = arith.constant 0.000000e+00 : f32
    %446 = vector.shape_cast %430 : vector<2x1xf32> to vector<2x1xf32>
    %447 = vector.broadcast %446 : vector<2x1xf32> to vector<2x4xf32>
    %448 = vector.broadcast %cst_95 : f32 to vector<2x4xf32>
    %449 = arith.select %445, %447, %448 : vector<2x4xi1>, vector<2x4xf32>
    %450 = arith.addf %443, %449 : vector<2x4xf32>
    %451 = tpu.concatenate %450, %392 in 1 : vector<2x4xf32>, vector<2x32xf32> -> vector<2x36xf32>
    %cst_96 = arith.constant dense<0.000000e+00> : vector<2x128xf32>
    %452 = tpu.matmul %451, %195, %cst_96 {dimension_numbers = #tpu.dot_dimension_numbers<[1], [0], [0], [1], [0, 0, 1, 1], [], []>} : vector<2x36xf32>, vector<36x128xf32>, vector<2x128xf32> -> vector<2x128xf32>
    %453 = vector.broadcast %196 : vector<1x128xf32> to vector<2x128xf32>
    %454 = arith.addf %452, %453 : vector<2x128xf32>
    %455 = vector.extract_strided_slice %454 {offsets = [0, 0], sizes = [2, 96], strides = [1, 1]} : vector<2x128xf32> to vector<2x96xf32>
    %cst_97 = arith.constant 5.000000e-01 : f32
    %456 = vector.broadcast %cst_97 : f32 to vector<2x96xf32>
    %457 = arith.mulf %456, %455 : vector<2x96xf32>
    %458 = math.tanh %457 : vector<2x96xf32>
    %cst_98 = arith.constant 5.000000e-01 : f32
    %459 = vector.broadcast %cst_98 : f32 to vector<2x96xf32>
    %460 = arith.mulf %459, %458 : vector<2x96xf32>
    %cst_99 = arith.constant 5.000000e-01 : f32
    %461 = vector.broadcast %cst_99 : f32 to vector<2x96xf32>
    %462 = arith.addf %460, %461 : vector<2x96xf32>
    %463 = vector.extract_strided_slice %454 {offsets = [0, 96], sizes = [2, 32], strides = [1, 1]} : vector<2x128xf32> to vector<2x32xf32>
    %464 = math.tanh %463 : vector<2x32xf32>
    %465 = vector.extract_strided_slice %462 {offsets = [0, 0], sizes = [2, 32], strides = [1, 1]} : vector<2x96xf32> to vector<2x32xf32>
    %466 = vector.extract_strided_slice %462 {offsets = [0, 32], sizes = [2, 32], strides = [1, 1]} : vector<2x96xf32> to vector<2x32xf32>
    %467 = vector.extract_strided_slice %462 {offsets = [0, 64], sizes = [2, 32], strides = [1, 1]} : vector<2x96xf32> to vector<2x32xf32>
    %468 = arith.mulf %466, %390 : vector<2x32xf32>
    %469 = arith.mulf %465, %464 : vector<2x32xf32>
    %470 = arith.addf %468, %469 : vector<2x32xf32>
    %471 = math.tanh %470 : vector<2x32xf32>
    %472 = arith.mulf %467, %471 : vector<2x32xf32>
    %473 = tpu.concatenate %472, %414 in 1 : vector<2x32xf32>, vector<2x32xf32> -> vector<2x64xf32>
    %cst_100 = arith.constant dense<0.000000e+00> : vector<2x128xf32>
    %474 = tpu.matmul %473, %197, %cst_100 {dimension_numbers = #tpu.dot_dimension_numbers<[1], [0], [0], [1], [0, 0, 1, 1], [], []>} : vector<2x64xf32>, vector<64x128xf32>, vector<2x128xf32> -> vector<2x128xf32>
    %475 = vector.broadcast %198 : vector<1x128xf32> to vector<2x128xf32>
    %476 = arith.addf %474, %475 : vector<2x128xf32>
    %477 = vector.extract_strided_slice %476 {offsets = [0, 0], sizes = [2, 96], strides = [1, 1]} : vector<2x128xf32> to vector<2x96xf32>
    %cst_101 = arith.constant 5.000000e-01 : f32
    %478 = vector.broadcast %cst_101 : f32 to vector<2x96xf32>
    %479 = arith.mulf %478, %477 : vector<2x96xf32>
    %480 = math.tanh %479 : vector<2x96xf32>
    %cst_102 = arith.constant 5.000000e-01 : f32
    %481 = vector.broadcast %cst_102 : f32 to vector<2x96xf32>
    %482 = arith.mulf %481, %480 : vector<2x96xf32>
    %cst_103 = arith.constant 5.000000e-01 : f32
    %483 = vector.broadcast %cst_103 : f32 to vector<2x96xf32>
    %484 = arith.addf %482, %483 : vector<2x96xf32>
    %485 = vector.extract_strided_slice %476 {offsets = [0, 96], sizes = [2, 32], strides = [1, 1]} : vector<2x128xf32> to vector<2x32xf32>
    %486 = math.tanh %485 : vector<2x32xf32>
    %487 = vector.extract_strided_slice %484 {offsets = [0, 0], sizes = [2, 32], strides = [1, 1]} : vector<2x96xf32> to vector<2x32xf32>
    %488 = vector.extract_strided_slice %484 {offsets = [0, 32], sizes = [2, 32], strides = [1, 1]} : vector<2x96xf32> to vector<2x32xf32>
    %489 = vector.extract_strided_slice %484 {offsets = [0, 64], sizes = [2, 32], strides = [1, 1]} : vector<2x96xf32> to vector<2x32xf32>
    %490 = arith.mulf %488, %412 : vector<2x32xf32>
    %491 = arith.mulf %487, %486 : vector<2x32xf32>
    %492 = arith.addf %490, %491 : vector<2x32xf32>
    %493 = math.tanh %492 : vector<2x32xf32>
    %494 = arith.mulf %489, %493 : vector<2x32xf32>
    %495 = arith.mulf %494, %202 : vector<2x32xf32>
    %cst_104 = arith.constant dense<0.000000e+00> : vector<2xf32>
    %496 = vector.multi_reduction <add>, %495, %cst_104 [1] : vector<2x32xf32> to vector<2xf32>
    %497 = vector.shape_cast %496 : vector<2xf32> to vector<2x1xf32>
    %498 = vector.broadcast %200 : vector<1x1xf32> to vector<2x1xf32>
    %499 = arith.addf %497, %498 : vector<2x1xf32>
    %c3_i32 = arith.constant 3 : i32
    %500 = vector.broadcast %c3_i32 : i32 to vector<2x4xi32>
    %501 = arith.cmpi eq, %208, %500 : vector<2x4xi32>
    %cst_105 = arith.constant 0.000000e+00 : f32
    %502 = vector.shape_cast %499 : vector<2x1xf32> to vector<2x1xf32>
    %503 = vector.broadcast %502 : vector<2x1xf32> to vector<2x4xf32>
    %504 = vector.broadcast %cst_105 : f32 to vector<2x4xf32>
    %505 = arith.select %501, %503, %504 : vector<2x4xi1>, vector<2x4xf32>
    %506 = arith.addf %426, %505 : vector<2x4xf32>
    %c0_106 = arith.constant 0 : index
    %c0_107 = arith.constant 0 : index
    %507 = vector.load %arg2[%c0_106, %c0_107] : memref<2x4xf32, #tpu.memory_space<vmem>>, vector<2x4xf32>
    tpu.vector_store %arg2[%c0_106, %c0_107], %506 {strides = array<i32>} : memref<2x4xf32, #tpu.memory_space<vmem>>, vector<2x4xf32>,
    return
  }
}

</mosaic_0001>

<llo_original>
// kernel: forward.1
$region0: #{forward.1}
  #allocation0 [shape = 'u32[]', space=smem, size = 0x4, offset = 0x4, fixed_abs, tag = 'smem constant byte address 0x4 - core index']
  #allocation1 [shape = 'u32[144,128]{1,0:T(1,128)}', space=vmem, size = 0x12000, scoped, tag = 'internal scratch']
  %s0 = inlined_call_operand.vmem [shape: f32[16,4], index: 0, kind: input, shape index: {}]
  %s1 = inlined_call_operand.hbm [shape: f32[216,256], index: 1, kind: input, shape index: {}]
  %s2 = inlined_call_operand.hbm [shape: f32[2,4], index: 2, kind: output, shape index: {}]
  %s3 = sld [smem:[#allocation0]]
  $region22: #{forward.1} parent=0
    _
  %s5 = ssub.s32 1, %s3
  %s6 = scalar_select 0, %s5, %s3
  $region1: #{forward.1} parent=0
    #allocation2 [shape = 'u8[221184]{0}', space=vmem, size = 0x36000, scoped, tag = 'input window, operand 1, single buffered']
    #allocation3 [shape = 's32[1]{0}', space=sflag, size = 0x4, scoped, tag = 'scoped memory for forward.1']
    #allocation4 [shape = 's32[1]{0}', space=sflag, size = 0x4, scoped, tag = 'scoped memory for forward.1']
    #allocation5 [shape = 'u8[1024]{0}', space=vmem, size = 0x400, scoped, tag = 'output window, operand 0, single buffered']
    %7 = vsyncpa [#allocation3], 0
    %8 = vsyncpa [#allocation4], 0
    // Predicated region
    $region2: #{forward.1} parent=1 // pred_check
      _
    $region3: #{forward.1} parent=1 // pred_check_branch
      %10 = sbr.rel (0) target = $region5
    $region4: #{forward.1} parent=1 // pred_region
      _
    $region5: #{forward.1} parent=1 // pred_fallthru
      _
    // Predicated region
    $region6: #{forward.1} parent=1 // pred_check
      _
    $region7: #{forward.1} parent=1 // pred_check_branch
      %12 = sbr.rel (0) target = $region9
    $region8: #{forward.1} parent=1 // pred_region
      %s14 = ssub.s32 6912, 6912
      %15 = vsyncadd [#allocation3], %s14
      %s16 = sshll.u32 [#allocation2], 4
      %s17 = int_to_ptr.vmem [resolvable:$true] %s16
      %22 = dma.hbm_to_vmem [thread:$0]  %s1, 6912, %s17, [#allocation3], 256, 256, 16
    $region9: #{forward.1} parent=1 // pred_fallthru
      _
    // Predicated region
    $region10: #{forward.1} parent=1 // pred_check
      _
    $region11: #{forward.1} parent=1 // pred_check_branch
      %24 = sbr.rel (0) target = $region13
    $region12: #{forward.1} parent=1 // pred_region
      %25 = dma.done [#allocation3], 6912
    $region13: #{forward.1} parent=1 // pred_fallthru
      _
    %v26 = vld [vmem:[%s0] sm:$0xff]
    %v27 = vld [vmem:[%s0 + $0x8] sm:$0xff]
    %v28 = vld [vmem:[#allocation2] sm:$0xf]
    %v29 = vld [vmem:[#allocation2 + $0x8] sm:$0xf]
    %v30 = vld [vmem:[#allocation2 + $0x10] sm:$0xf]
    %v31 = vld [vmem:[#allocation2 + $0x18] sm:$0xf]
    %s32 = scalar_lea.vmem [#allocation2], 32
    %v33 = vld [vmem:[%s32] ss:$8 sm:$0x3]
    %v34 = vld [vmem:[#allocation2 + $0x30] sm:$0xff]
    %v35 = vld [vmem:[#allocation2 + $0x38] sm:$0xff]
    %v36 = vld [vmem:[#allocation2 + $0x40] sm:$0xff]
    %v37 = vld [vmem:[#allocation2 + $0x48] sm:$0xff]
    %v38 = vld [vmem:[#allocation2 + $0x50] sm:$0xff]
    %v39 = vld [vmem:[#allocation2 + $0x58] sm:$0xff]
    %v40 = vld [vmem:[#allocation2 + $0x60] sm:$0xff]
    %v41 = vld [vmem:[#allocation2 + $0x68] sm:$0xff]
    %v42 = vld [vmem:[#allocation2 + $0x70] sm:$0xff]
    %v43 = vld [vmem:[#allocation2 + $0x78] sm:$0xff]
    %v44 = vld [vmem:[#allocation2 + $0x80] sm:$0xff]
    %v45 = vld [vmem:[#allocation2 + $0x88] sm:$0xff]
    %v46 = vld [vmem:[#allocation2 + $0x90] sm:$0xff]
    %v47 = vld [vmem:[#allocation2 + $0x98] sm:$0xff]
    %v48 = vld [vmem:[#allocation2 + $0xa0] sm:$0xff]
    %v49 = vld [vmem:[#allocation2 + $0xa8] sm:$0xff]
    %vm50 = vcmask 31744
    %v52 = vsel %vm50, %v26, 0
    %v55 = vsel %vm50, %v27, 0
    %vm57 = vcmask 1043456
    %v59 = vsel %vm57, %v28, 0
    %v62 = vsel %vm57, %v29, 0
    %64 = vmatprep.subr.mxu0 0.0
    %65 = vmatpush1.msra.mxu0 0.0
    %66 = vmatprep.subr.mxu0 0.0
    %67 = vmatpush1.msra.mxu0 0.0
    %68 = vmatprep.subr.mxu0 0.0
    %69 = vmatpush1.msra.mxu0 0.0
    %70 = vmatprep.subr.mxu0 0.0
    %71 = vmatpush1.msra.mxu0 0.0
    %72 = vmatprep.subr.mxu0 0.0
    %73 = vmatpush1.msra.mxu0 0.0
    %74 = vmatprep.subr.mxu0 0.0
    %75 = vmatpush1.msra.mxu0 0.0
    %76 = vmatprep.subr.mxu0 0.0
    %77 = vmatpush1.msra.mxu0 0.0
    %78 = vmatprep.subr.mxu0 0.0
    %79 = vmatpush1.msra.mxu0 0.0
    %80 = vmatprep.subr.mxu0 0.0
    %81 = vmatpush1.msra.mxu0 0.0
    %82 = vmatprep.subr.mxu0 0.0
    %83 = vmatpush1.msra.mxu0 0.0
    %84 = vmatprep.subr.mxu0 0.0
    %85 = vmatpush1.msra.mxu0 0.0
    %86 = vmatprep.subr.mxu0 0.0
    %87 = vmatpush1.msra.mxu0 0.0
    %88 = vmatprep.subr.mxu0 0.0
    %89 = vmatpush1.msra.mxu0 0.0
    %90 = vmatprep.subr.mxu0 0.0
    %91 = vmatpush1.msra.mxu0 0.0
    %92 = vmatprep.subr.mxu0 0.0
    %93 = vmatpush1.msra.mxu0 0.0
    %94 = vmatprep.subr.mxu0 %v62
    %95 = vmatpush1.msra.mxu0 %v59
    %96 = vmatprep.subr.mxu0 0.0
    %97 = vmatpush2.msra.mxu0 0.0
    %98 = vmatprep.subr.mxu0 0.0
    %99 = vmatpush2.msra.mxu0 0.0
    %100 = vmatprep.subr.mxu0 0.0
    %101 = vmatpush2.msra.mxu0 0.0
    %102 = vmatprep.subr.mxu0 0.0
    %103 = vmatpush2.msra.mxu0 0.0
    %104 = vmatprep.subr.mxu0 0.0
    %105 = vmatpush2.msra.mxu0 0.0
    %106 = vmatprep.subr.mxu0 0.0
    %107 = vmatpush2.msra.mxu0 0.0
    %108 = vmatprep.subr.mxu0 0.0
    %109 = vmatpush2.msra.mxu0 0.0
    %110 = vmatprep.subr.mxu0 0.0
    %111 = vmatpush2.msra.mxu0 0.0
    %112 = vmatprep.subr.mxu0 0.0
    %113 = vmatpush2.msra.mxu0 0.0
    %114 = vmatprep.subr.mxu0 0.0
    %115 = vmatpush2.msra.mxu0 0.0
    %116 = vmatprep.subr.mxu0 0.0
    %117 = vmatpush2.msra.mxu0 0.0
    %118 = vmatprep.subr.mxu0 0.0
    %119 = vmatpush2.msra.mxu0 0.0
    %120 = vmatprep.subr.mxu0 0.0
    %121 = vmatpush2.msra.mxu0 0.0
    %122 = vmatprep.subr.mxu0 0.0
    %123 = vmatpush2.msra.mxu0 0.0
    %124 = vmatprep.subr.mxu0 0.0
    %125 = vmatpush2.msra.mxu0 0.0
    %126 = vmatprep.subr.mxu0 0.0
    %127 = vmatpush2.msra.mxu0 0.0
    %128 = vmatprep.mubr.f32.mxu0 0.0
    %129 = vmatmul.mubr.f32.gmra.mxu0 %v52
    %v130 = vpop.f32.mrf.mxu0
    %v131 = vadd.f32 0.0, %v130
    %v132 = vpop.f32.mrf.mxu0
    %v133 = vadd.f32 0.0, %v132
    %134 = vmatprep.mubr.f32.mxu0 0.0
    %135 = vmatmul.mubr.f32.gmra.mxu0 %v55
    %v136 = vpop.f32.mrf.mxu0
    %v137 = vadd.f32 0.0, %v136
    %v138 = vpop.f32.mrf.mxu0
    %v139 = vadd.f32 0.0, %v138
    %140 = vdwg.mxu0
    %v142 = vlaneseq
    %v143 = vshrl.u32 %v142, 7
    %v144 = vsub.s32 0, %v143
    %v145 = vrot.slane %v33, %v144
    %v146 = vlaneseq
    %v147 = vshrl.u32 %v146, 7
    %v148 = vsub.s32 1, %v147
    %v149 = vrot.slane %v33, %v148
    %v153 = vsel %vm57, %v30, 0
    %v156 = vsel %vm57, %v31, 0
    %158 = vmatprep.subr.mxu0 0.0
    %159 = vmatpush1.msra.mxu0 0.0
    %160 = vmatprep.subr.mxu0 0.0
    %161 = vmatpush1.msra.mxu0 0.0
    %162 = vmatprep.subr.mxu0 0.0
    %163 = vmatpush1.msra.mxu0 0.0
    %164 = vmatprep.subr.mxu0 0.0
    %165 = vmatpush1.msra.mxu0 0.0
    %166 = vmatprep.subr.mxu0 0.0
    %167 = vmatpush1.msra.mxu0 0.0
    %168 = vmatprep.subr.mxu0 0.0
    %169 = vmatpush1.msra.mxu0 0.0
    %170 = vmatprep.subr.mxu0 0.0
    %171 = vmatpush1.msra.mxu0 0.0
    %172 = vmatprep.subr.mxu0 0.0
    %173 = vmatpush1.msra.mxu0 0.0
    %174 = vmatprep.subr.mxu0 0.0
    %175 = vmatpush1.msra.mxu0 0.0
    %176 = vmatprep.subr.mxu0 0.0
    %177 = vmatpush1.msra.mxu0 0.0
    %178 = vmatprep.subr.mxu0 0.0
    %179 = vmatpush1.msra.mxu0 0.0
    %180 = vmatprep.subr.mxu0 0.0
    %181 = vmatpush1.msra.mxu0 0.0
    %182 = vmatprep.subr.mxu0 0.0
    %183 = vmatpush1.msra.mxu0 0.0
    %184 = vmatprep.subr.mxu0 0.0
    %185 = vmatpush1.msra.mxu0 0.0
    %186 = vmatprep.subr.mxu0 0.0
    %187 = vmatpush1.msra.mxu0 0.0
    %188 = vmatprep.subr.mxu0 %v156
    %189 = vmatpush1.msra.mxu0 %v153
    %190 = vmatprep.subr.mxu0 0.0
    %191 = vmatpush2.msra.mxu0 0.0
    %192 = vmatprep.subr.mxu0 0.0
    %193 = vmatpush2.msra.mxu0 0.0
    %194 = vmatprep.subr.mxu0 0.0
    %195 = vmatpush2.msra.mxu0 0.0
    %196 = vmatprep.subr.mxu0 0.0
    %197 = vmatpush2.msra.mxu0 0.0
    %198 = vmatprep.subr.mxu0 0.0
    %199 = vmatpush2.msra.mxu0 0.0
    %200 = vmatprep.subr.mxu0 0.0
    %201 = vmatpush2.msra.mxu0 0.0
    %202 = vmatprep.subr.mxu0 0.0
    %203 = vmatpush2.msra.mxu0 0.0
    %204 = vmatprep.subr.mxu0 0.0
    %205 = vmatpush2.msra.mxu0 0.0
    %206 = vmatprep.subr.mxu0 0.0
    %207 = vmatpush2.msra.mxu0 0.0
    %208 = vmatprep.subr.mxu0 0.0
    %209 = vmatpush2.msra.mxu0 0.0
    %210 = vmatprep.subr.mxu0 0.0
    %211 = vmatpush2.msra.mxu0 0.0
    %212 = vmatprep.subr.mxu0 0.0
    %213 = vmatpush2.msra.mxu0 0.0
    %214 = vmatprep.subr.mxu0 0.0
    %215 = vmatpush2.msra.mxu0 0.0
    %216 = vmatprep.subr.mxu0 0.0
    %217 = vmatpush2.msra.mxu0 0.0
    %218 = vmatprep.subr.mxu0 0.0
    %219 = vmatpush2.msra.mxu0 0.0
    %220 = vmatprep.subr.mxu0 0.0
    %221 = vmatpush2.msra.mxu0 0.0
    %222 = vmatprep.mubr.f32.mxu0 0.0
    %223 = vmatmul.mubr.f32.gmra.mxu0 %v52
    %v224 = vpop.f32.mrf.mxu0
    %v225 = vadd.f32 %v145, %v224
    %v226 = vpop.f32.mrf.mxu0
    %v227 = vadd.f32 %v149, %v226
    %228 = vmatprep.mubr.f32.mxu0 0.0
    %229 = vmatmul.mubr.f32.gmra.mxu0 %v55
    %v230 = vpop.f32.mrf.mxu0
    %v231 = vadd.f32 %v145, %v230
    %v232 = vpop.f32.mrf.mxu0
    %v233 = vadd.f32 %v149, %v232
    %234 = vdwg.mxu0
    %v237 = vrot.slane %v231, 6
    %v238 = vrot.slane %v233, 6
    %v241 = vadd.f32 %v131, %v237
    %v242 = vadd.f32 %v133, %v238
    %vm243 = vcmask 523264
    %v245 = vsel %vm243, 0.0, 0
    %247 = vmatprep.subr.mxu0 0.0
    %248 = vmatpush1.msra.mxu0 0.0
    %249 = vmatprep.subr.mxu0 0.0
    %250 = vmatpush1.msra.mxu0 0.0
    %251 = vmatprep.subr.mxu0 0.0
    %252 = vmatpush1.msra.mxu0 0.0
    %253 = vmatprep.subr.mxu0 0.0
    %254 = vmatpush1.msra.mxu0 0.0
    %255 = vmatprep.subr.mxu0 0.0
    %256 = vmatpush1.msra.mxu0 0.0
    %257 = vmatprep.subr.mxu0 0.0
    %258 = vmatpush1.msra.mxu0 0.0
    %259 = vmatprep.subr.mxu0 0.0
    %260 = vmatpush1.msra.mxu0 0.0
    %261 = vmatprep.subr.mxu0 0.0
    %262 = vmatpush1.msra.mxu0 0.0
    %263 = vmatprep.subr.mxu0 %v49
    %264 = vmatpush1.msra.mxu0 %v48
    %265 = vmatprep.subr.mxu0 %v47
    %266 = vmatpush1.msra.mxu0 %v46
    %267 = vmatprep.subr.mxu0 %v45
    %268 = vmatpush1.msra.mxu0 %v44
    %269 = vmatprep.subr.mxu0 %v43
    %270 = vmatpush1.msra.mxu0 %v42
    %271 = vmatprep.subr.mxu0 %v41
    %272 = vmatpush1.msra.mxu0 %v40
    %273 = vmatprep.subr.mxu0 %v39
    %274 = vmatpush1.msra.mxu0 %v38
    %275 = vmatprep.subr.mxu0 %v37
    %276 = vmatpush1.msra.mxu0 %v36
    %277 = vmatprep.subr.mxu0 %v35
    %278 = vmatpush1.msra.mxu0 %v34
    %279 = vmatprep.subr.mxu0 0.0
    %280 = vmatpush2.msra.mxu0 0.0
    %281 = vmatprep.subr.mxu0 0.0
    %282 = vmatpush2.msra.mxu0 0.0
    %283 = vmatprep.subr.mxu0 0.0
    %284 = vmatpush2.msra.mxu0 0.0
    %285 = vmatprep.subr.mxu0 0.0
    %286 = vmatpush2.msra.mxu0 0.0
    %287 = vmatprep.subr.mxu0 0.0
    %288 = vmatpush2.msra.mxu0 0.0
    %289 = vmatprep.subr.mxu0 0.0
    %290 = vmatpush2.msra.mxu0 0.0
    %291 = vmatprep.subr.mxu0 0.0
    %292 = vmatpush2.msra.mxu0 0.0
    %293 = vmatprep.subr.mxu0 0.0
    %294 = vmatpush2.msra.mxu0 0.0
    %295 = vmatprep.subr.mxu0 0.0
    %296 = vmatpush2.msra.mxu0 0.0
    %297 = vmatprep.subr.mxu0 0.0
    %298 = vmatpush2.msra.mxu0 0.0
    %299 = vmatprep.subr.mxu0 0.0
    %300 = vmatpush2.msra.mxu0 0.0
    %301 = vmatprep.subr.mxu0 0.0
    %302 = vmatpush2.msra.mxu0 0.0
    %303 = vmatprep.subr.mxu0 0.0
    %304 = vmatpush2.msra.mxu0 0.0
    %305 = vmatprep.subr.mxu0 0.0
    %306 = vmatpush2.msra.mxu0 0.0
    %307 = vmatprep.subr.mxu0 0.0
    %308 = vmatpush2.msra.mxu0 0.0
    %309 = vmatprep.subr.mxu0 0.0
    %310 = vmatpush2.msra.mxu0 0.0
    %311 = vmatprep.mubr.f32.mxu0 0.0
    %312 = vmatmul.mubr.f32.gmra.mxu0 %v245
    %v313 = vpop.f32.mrf.mxu0
    %v314 = vadd.f32 0.0, %v313
    %v315 = vpop.f32.mrf.mxu0
    %v316 = vadd.f32 0.0, %v315
    %317 = vdwg.mxu0
    %v318 = vadd.f32 %v241, %v314
    %v319 = vadd.f32 %v242, %v316
    %v320 = vmul.f32 %v318, 0.5
    %v321 = vmul.f32 %v319, 0.5
    %v322 = vtanh.pop %v320
    %v323 = vtanh.pop %v321
    %v324 = vmul.f32 %v322, 0.5
    %v325 = vmul.f32 %v323, 0.5
    %v326 = vadd.f32 %v324, 0.5
    %v327 = vadd.f32 %v325, 0.5
    %v328 = vtanh.pop %v319
    %v329 = vmul.f32 %v326, 0.0
    %331 = vrot.lane.b32.xlu0 %v328, 64
    %v332 = vpop.permute.xlu0 %331
    %v334 = vmul.f32 %v326, %v332
    %336 = vrot.lane.b32.xlu0 %v334, 64
    %v337 = vpop.permute.xlu0 %336
    %v339 = vadd.f32 %v329, %v337
    %v340 = vtanh.pop %v339
    %342 = vrot.lane.b32.xlu0 %v340, 64
    %v343 = vpop.permute.xlu0 %342
    %v345 = vmul.f32 %v327, %v343
    %v346 = vrot.slane %v231, 2
    %v347 = vrot.slane %v233, 2
    %v350 = vadd.f32 %v131, %v346
    %v351 = vadd.f32 %v133, %v347
    %v353 = vsel %vm243, %v345, 0
    %355 = vmatprep.subr.mxu0 0.0
    %356 = vmatpush1.msra.mxu0 0.0
    %357 = vmatprep.subr.mxu0 0.0
    %358 = vmatpush1.msra.mxu0 0.0
    %359 = vmatprep.subr.mxu0 0.0
    %360 = vmatpush1.msra.mxu0 0.0
    %361 = vmatprep.subr.mxu0 0.0
    %362 = vmatpush1.msra.mxu0 0.0
    %363 = vmatprep.subr.mxu0 0.0
    %364 = vmatpush1.msra.mxu0 0.0
    %365 = vmatprep.subr.mxu0 0.0
    %366 = vmatpush1.msra.mxu0 0.0
    %367 = vmatprep.subr.mxu0 0.0
    %368 = vmatpush1.msra.mxu0 0.0
    %369 = vmatprep.subr.mxu0 0.0
    %370 = vmatpush1.msra.mxu0 0.0
    %371 = vmatprep.subr.mxu0 %v49
    %372 = vmatpush1.msra.mxu0 %v48
    %373 = vmatprep.subr.mxu0 %v47
    %374 = vmatpush1.msra.mxu0 %v46
    %375 = vmatprep.subr.mxu0 %v45
    %376 = vmatpush1.msra.mxu0 %v44
    %377 = vmatprep.subr.mxu0 %v43
    %378 = vmatpush1.msra.mxu0 %v42
    %379 = vmatprep.subr.mxu0 %v41
    %380 = vmatpush1.msra.mxu0 %v40
    %381 = vmatprep.subr.mxu0 %v39
    %382 = vmatpush1.msra.mxu0 %v38
    %383 = vmatprep.subr.mxu0 %v37
    %384 = vmatpush1.msra.mxu0 %v36
    %385 = vmatprep.subr.mxu0 %v35
    %386 = vmatpush1.msra.mxu0 %v34
    %387 = vmatprep.subr.mxu0 0.0
    %388 = vmatpush2.msra.mxu0 0.0
    %389 = vmatprep.subr.mxu0 0.0
    %390 = vmatpush2.msra.mxu0 0.0
    %391 = vmatprep.subr.mxu0 0.0
    %392 = vmatpush2.msra.mxu0 0.0
    %393 = vmatprep.subr.mxu0 0.0
    %394 = vmatpush2.msra.mxu0 0.0
    %395 = vmatprep.subr.mxu0 0.0
    %396 = vmatpush2.msra.mxu0 0.0
    %397 = vmatprep.subr.mxu0 0.0
    %398 = vmatpush2.msra.mxu0 0.0
    %399 = vmatprep.subr.mxu0 0.0
    %400 = vmatpush2.msra.mxu0 0.0
    %401 = vmatprep.subr.mxu0 0.0
    %402 = vmatpush2.msra.mxu0 0.0
    %403 = vmatprep.subr.mxu0 0.0
    %404 = vmatpush2.msra.mxu0 0.0
    %405 = vmatprep.subr.mxu0 0.0
    %406 = vmatpush2.msra.mxu0 0.0
    %407 = vmatprep.subr.mxu0 0.0
    %408 = vmatpush2.msra.mxu0 0.0
    %409 = vmatprep.subr.mxu0 0.0
    %410 = vmatpush2.msra.mxu0 0.0
    %411 = vmatprep.subr.mxu0 0.0
    %412 = vmatpush2.msra.mxu0 0.0
    %413 = vmatprep.subr.mxu0 0.0
    %414 = vmatpush2.msra.mxu0 0.0
    %415 = vmatprep.subr.mxu0 0.0
    %416 = vmatpush2.msra.mxu0 0.0
    %417 = vmatprep.subr.mxu0 0.0
    %418 = vmatpush2.msra.mxu0 0.0
    %419 = vmatprep.mubr.f32.mxu0 0.0
    %420 = vmatmul.mubr.f32.gmra.mxu0 %v353
    %v421 = vpop.f32.mrf.mxu0
    %v422 = vadd.f32 0.0, %v421
    %v423 = vpop.f32.mrf.mxu0
    %v424 = vadd.f32 0.0, %v423
    %425 = vdwg.mxu0
    %v428 = vrot.slane %v422, 6
    %v429 = vrot.slane %v424, 6
    %v432 = vadd.f32 %v350, %v428
    %v433 = vadd.f32 %v351, %v429
    %v434 = vmul.f32 %v432, 0.5
    %v435 = vmul.f32 %v433, 0.5
    %v436 = vtanh.pop %v434
    %v437 = vtanh.pop %v435
    %v438 = vmul.f32 %v436, 0.5
    %v439 = vmul.f32 %v437, 0.5
    %v440 = vadd.f32 %v438, 0.5
    %v441 = vadd.f32 %v439, 0.5
    %v442 = vtanh.pop %v433
    %v444 = vrot.slane %v339, 6
    %v446 = vmul.f32 %v440, %v444
    %448 = vrot.lane.b32.xlu0 %v442, 64
    %v449 = vpop.permute.xlu0 %448
    %v451 = vmul.f32 %v440, %v449
    %453 = vrot.lane.b32.xlu0 %v451, 64
    %v454 = vpop.permute.xlu0 %453
    %v456 = vadd.f32 %v446, %v454
    %v457 = vtanh.pop %v456
    %459 = vrot.lane.b32.xlu0 %v457, 64
    %v460 = vpop.permute.xlu0 %459
    %v462 = vmul.f32 %v441, %v460
    %v464 = vrot.slane %v462, 2
    %v465 = vsel %vm243, %v464, 0
    %467 = vmatprep.subr.mxu0 0.0
    %468 = vmatpush1.msra.mxu0 0.0
    %469 = vmatprep.subr.mxu0 0.0
    %470 = vmatpush1.msra.mxu0 0.0
    %471 = vmatprep.subr.mxu0 0.0
    %472 = vmatpush1.msra.mxu0 0.0
    %473 = vmatprep.subr.mxu0 0.0
    %474 = vmatpush1.msra.mxu0 0.0
    %475 = vmatprep.subr.mxu0 0.0
    %476 = vmatpush1.msra.mxu0 0.0
    %477 = vmatprep.subr.mxu0 0.0
    %478 = vmatpush1.msra.mxu0 0.0
    %479 = vmatprep.subr.mxu0 0.0
    %480 = vmatpush1.msra.mxu0 0.0
    %481 = vmatprep.subr.mxu0 0.0
    %482 = vmatpush1.msra.mxu0 0.0
    %483 = vmatprep.subr.mxu0 %v49
    %484 = vmatpush1.msra.mxu0 %v48
    %485 = vmatprep.subr.mxu0 %v47
    %486 = vmatpush1.msra.mxu0 %v46
    %487 = vmatprep.subr.mxu0 %v45
    %488 = vmatpush1.msra.mxu0 %v44
    %489 = vmatprep.subr.mxu0 %v43
    %490 = vmatpush1.msra.mxu0 %v42
    %491 = vmatprep.subr.mxu0 %v41
    %492 = vmatpush1.msra.mxu0 %v40
    %493 = vmatprep.subr.mxu0 %v39
    %494 = vmatpush1.msra.mxu0 %v38
    %495 = vmatprep.subr.mxu0 %v37
    %496 = vmatpush1.msra.mxu0 %v36
    %497 = vmatprep.subr.mxu0 %v35
    %498 = vmatpush1.msra.mxu0 %v34
    %499 = vmatprep.subr.mxu0 0.0
    %500 = vmatpush2.msra.mxu0 0.0
    %501 = vmatprep.subr.mxu0 0.0
    %502 = vmatpush2.msra.mxu0 0.0
    %503 = vmatprep.subr.mxu0 0.0
    %504 = vmatpush2.msra.mxu0 0.0
    %505 = vmatprep.subr.mxu0 0.0
    %506 = vmatpush2.msra.mxu0 0.0
    %507 = vmatprep.subr.mxu0 0.0
    %508 = vmatpush2.msra.mxu0 0.0
    %509 = vmatprep.subr.mxu0 0.0
    %510 = vmatpush2.msra.mxu0 0.0
    %511 = vmatprep.subr.mxu0 0.0
    %512 = vmatpush2.msra.mxu0 0.0
    %513 = vmatprep.subr.mxu0 0.0
    %514 = vmatpush2.msra.mxu0 0.0
    %515 = vmatprep.subr.mxu0 0.0
    %516 = vmatpush2.msra.mxu0 0.0
    %517 = vmatprep.subr.mxu0 0.0
    %518 = vmatpush2.msra.mxu0 0.0
    %519 = vmatprep.subr.mxu0 0.0
    %520 = vmatpush2.msra.mxu0 0.0
    %521 = vmatprep.subr.mxu0 0.0
    %522 = vmatpush2.msra.mxu0 0.0
    %523 = vmatprep.subr.mxu0 0.0
    %524 = vmatpush2.msra.mxu0 0.0
    %525 = vmatprep.subr.mxu0 0.0
    %526 = vmatpush2.msra.mxu0 0.0
    %527 = vmatprep.subr.mxu0 0.0
    %528 = vmatpush2.msra.mxu0 0.0
    %529 = vmatprep.subr.mxu0 0.0
    %530 = vmatpush2.msra.mxu0 0.0
    %531 = vmatprep.mubr.f32.mxu0 0.0
    %532 = vmatmul.mubr.f32.gmra.mxu0 %v465
    %v533 = vpop.f32.mrf.mxu0
    %v534 = vadd.f32 0.0, %v533
    %v535 = vpop.f32.mrf.mxu0
    %v536 = vadd.f32 0.0, %v535
    %537 = vdwg.mxu0
    %v540 = vrot.slane %v534, 4
    %v541 = vrot.slane %v536, 4
    %v544 = vadd.f32 %v241, %v540
    %v545 = vadd.f32 %v242, %v541
    %v546 = vmul.f32 %v544, 0.5
    %v547 = vmul.f32 %v545, 0.5
    %v548 = vtanh.pop %v546
    %v549 = vtanh.pop %v547
    %v550 = vmul.f32 %v548, 0.5
    %v551 = vmul.f32 %v549, 0.5
    %v552 = vadd.f32 %v550, 0.5
    %v553 = vadd.f32 %v551, 0.5
    %v554 = vtanh.pop %v545
    %v556 = vrot.slane %v456, 6
    %v558 = vmul.f32 %v552, %v556
    %560 = vrot.lane.b32.xlu0 %v554, 64
    %v561 = vpop.permute.xlu0 %560
    %v563 = vmul.f32 %v552, %v561
    %565 = vrot.lane.b32.xlu0 %v563, 64
    %v566 = vpop.permute.xlu0 %565
    %v568 = vadd.f32 %v558, %v566
    %v569 = vtanh.pop %v568
    %571 = vrot.lane.b32.xlu0 %v569, 64
    %v572 = vpop.permute.xlu0 %571
    %v574 = vmul.f32 %v553, %v572
    %v576 = vrot.slane %v574, 4
    %v577 = vsel %vm243, %v576, 0
    %579 = vmatprep.subr.mxu0 0.0
    %580 = vmatpush1.msra.mxu0 0.0
    %581 = vmatprep.subr.mxu0 0.0
    %582 = vmatpush1.msra.mxu0 0.0
    %583 = vmatprep.subr.mxu0 0.0
    %584 = vmatpush1.msra.mxu0 0.0
    %585 = vmatprep.subr.mxu0 0.0
    %586 = vmatpush1.msra.mxu0 0.0
    %587 = vmatprep.subr.mxu0 0.0
    %588 = vmatpush1.msra.mxu0 0.0
    %589 = vmatprep.subr.mxu0 0.0
    %590 = vmatpush1.msra.mxu0 0.0
    %591 = vmatprep.subr.mxu0 0.0
    %592 = vmatpush1.msra.mxu0 0.0
    %593 = vmatprep.subr.mxu0 0.0
    %594 = vmatpush1.msra.mxu0 0.0
    %595 = vmatprep.subr.mxu0 %v49
    %596 = vmatpush1.msra.mxu0 %v48
    %597 = vmatprep.subr.mxu0 %v47
    %598 = vmatpush1.msra.mxu0 %v46
    %599 = vmatprep.subr.mxu0 %v45
    %600 = vmatpush1.msra.mxu0 %v44
    %601 = vmatprep.subr.mxu0 %v43
    %602 = vmatpush1.msra.mxu0 %v42
    %603 = vmatprep.subr.mxu0 %v41
    %604 = vmatpush1.msra.mxu0 %v40
    %605 = vmatprep.subr.mxu0 %v39
    %606 = vmatpush1.msra.mxu0 %v38
    %607 = vmatprep.subr.mxu0 %v37
    %608 = vmatpush1.msra.mxu0 %v36
    %609 = vmatprep.subr.mxu0 %v35
    %610 = vmatpush1.msra.mxu0 %v34
    %611 = vmatprep.subr.mxu0 0.0
    %612 = vmatpush2.msra.mxu0 0.0
    %613 = vmatprep.subr.mxu0 0.0
    %614 = vmatpush2.msra.mxu0 0.0
    %615 = vmatprep.subr.mxu0 0.0
    %616 = vmatpush2.msra.mxu0 0.0
    %617 = vmatprep.subr.mxu0 0.0
    %618 = vmatpush2.msra.mxu0 0.0
    %619 = vmatprep.subr.mxu0 0.0
    %620 = vmatpush2.msra.mxu0 0.0
    %621 = vmatprep.subr.mxu0 0.0
    %622 = vmatpush2.msra.mxu0 0.0
    %623 = vmatprep.subr.mxu0 0.0
    %624 = vmatpush2.msra.mxu0 0.0
    %625 = vmatprep.subr.mxu0 0.0
    %626 = vmatpush2.msra.mxu0 0.0
    %627 = vmatprep.subr.mxu0 0.0
    %628 = vmatpush2.msra.mxu0 0.0
    %629 = vmatprep.subr.mxu0 0.0
    %630 = vmatpush2.msra.mxu0 0.0
    %631 = vmatprep.subr.mxu0 0.0
    %632 = vmatpush2.msra.mxu0 0.0
    %633 = vmatprep.subr.mxu0 0.0
    %634 = vmatpush2.msra.mxu0 0.0
    %635 = vmatprep.subr.mxu0 0.0
    %636 = vmatpush2.msra.mxu0 0.0
    %637 = vmatprep.subr.mxu0 0.0
    %638 = vmatpush2.msra.mxu0 0.0
    %639 = vmatprep.subr.mxu0 0.0
    %640 = vmatpush2.msra.mxu0 0.0
    %641 = vmatprep.subr.mxu0 0.0
    %642 = vmatpush2.msra.mxu0 0.0
    %643 = vmatprep.mubr.f32.mxu0 0.0
    %644 = vmatmul.mubr.f32.gmra.mxu0 %v577
    %v645 = vpop.f32.mrf.mxu0
    %v646 = vadd.f32 0.0, %v645
    %v647 = vpop.f32.mrf.mxu0
    %v648 = vadd.f32 0.0, %v647
    %649 = vdwg.mxu0
    %v652 = vrot.slane %v646, 2
    %v653 = vrot.slane %v648, 2
    %v656 = vadd.f32 %v350, %v652
    %v657 = vadd.f32 %v351, %v653
    %v658 = vmul.f32 %v656, 0.5
    %v659 = vmul.f32 %v657, 0.5
    %v660 = vtanh.pop %v658
    %v661 = vtanh.pop %v659
    %v662 = vmul.f32 %v660, 0.5
    %v663 = vmul.f32 %v661, 0.5
    %v664 = vadd.f32 %v662, 0.5
    %v665 = vadd.f32 %v663, 0.5
    %v666 = vtanh.pop %v657
    %v668 = vrot.slane %v568, 6
    %v670 = vmul.f32 %v664, %v668
    %672 = vrot.lane.b32.xlu0 %v666, 64
    %v673 = vpop.permute.xlu0 %672
    %v675 = vmul.f32 %v664, %v673
    %677 = vrot.lane.b32.xlu0 %v675, 64
    %v678 = vpop.permute.xlu0 %677
    %v680 = vadd.f32 %v670, %v678
    %v681 = vtanh.pop %v680
    %683 = vrot.lane.b32.xlu0 %v681, 64
    %v684 = vpop.permute.xlu0 %683
    %v686 = vmul.f32 %v665, %v684
    %v689 = vrot.slane %v225, 6
    %v690 = vrot.slane %v227, 6
    %v693 = vadd.f32 %v137, %v689
    %v694 = vadd.f32 %v139, %v690
    %v696 = vrot.slane %v686, 6
    %v697 = vsel %vm243, %v696, 0
    %699 = vmatprep.subr.mxu0 0.0
    %700 = vmatpush1.msra.mxu0 0.0
    %701 = vmatprep.subr.mxu0 0.0
    %702 = vmatpush1.msra.mxu0 0.0
    %703 = vmatprep.subr.mxu0 0.0
    %704 = vmatpush1.msra.mxu0 0.0
    %705 = vmatprep.subr.mxu0 0.0
    %706 = vmatpush1.msra.mxu0 0.0
    %707 = vmatprep.subr.mxu0 0.0
    %708 = vmatpush1.msra.mxu0 0.0
    %709 = vmatprep.subr.mxu0 0.0
    %710 = vmatpush1.msra.mxu0 0.0
    %711 = vmatprep.subr.mxu0 0.0
    %712 = vmatpush1.msra.mxu0 0.0
    %713 = vmatprep.subr.mxu0 0.0
    %714 = vmatpush1.msra.mxu0 0.0
    %715 = vmatprep.subr.mxu0 %v49
    %716 = vmatpush1.msra.mxu0 %v48
    %717 = vmatprep.subr.mxu0 %v47
    %718 = vmatpush1.msra.mxu0 %v46
    %719 = vmatprep.subr.mxu0 %v45
    %720 = vmatpush1.msra.mxu0 %v44
    %721 = vmatprep.subr.mxu0 %v43
    %722 = vmatpush1.msra.mxu0 %v42
    %723 = vmatprep.subr.mxu0 %v41
    %724 = vmatpush1.msra.mxu0 %v40
    %725 = vmatprep.subr.mxu0 %v39
    %726 = vmatpush1.msra.mxu0 %v38
    %727 = vmatprep.subr.mxu0 %v37
    %728 = vmatpush1.msra.mxu0 %v36
    %729 = vmatprep.subr.mxu0 %v35
    %730 = vmatpush1.msra.mxu0 %v34
    %731 = vmatprep.subr.mxu0 0.0
    %732 = vmatpush2.msra.mxu0 0.0
    %733 = vmatprep.subr.mxu0 0.0
    %734 = vmatpush2.msra.mxu0 0.0
    %735 = vmatprep.subr.mxu0 0.0
    %736 = vmatpush2.msra.mxu0 0.0
    %737 = vmatprep.subr.mxu0 0.0
    %738 = vmatpush2.msra.mxu0 0.0
    %739 = vmatprep.subr.mxu0 0.0
    %740 = vmatpush2.msra.mxu0 0.0
    %741 = vmatprep.subr.mxu0 0.0
    %742 = vmatpush2.msra.mxu0 0.0
    %743 = vmatprep.subr.mxu0 0.0
    %744 = vmatpush2.msra.mxu0 0.0
    %745 = vmatprep.subr.mxu0 0.0
    %746 = vmatpush2.msra.mxu0 0.0
    %747 = vmatprep.subr.mxu0 0.0
    %748 = vmatpush2.msra.mxu0 0.0
    %749 = vmatprep.subr.mxu0 0.0
    %750 = vmatpush2.msra.mxu0 0.0
    %751 = vmatprep.subr.mxu0 0.0
    %752 = vmatpush2.msra.mxu0 0.0
    %753 = vmatprep.subr.mxu0 0.0
    %754 = vmatpush2.msra.mxu0 0.0
    %755 = vmatprep.subr.mxu0 0.0
    %756 = vmatpush2.msra.mxu0 0.0
    %757 = vmatprep.subr.mxu0 0.0
    %758 = vmatpush2.msra.mxu0 0.0
    %759 = vmatprep.subr.mxu0 0.0
    %760 = vmatpush2.msra.mxu0 0.0
    %761 = vmatprep.subr.mxu0 0.0
    %762 = vmatpush2.msra.mxu0 0.0
    %763 = vmatprep.mubr.f32.mxu0 0.0
    %764 = vmatmul.mubr.f32.gmra.mxu0 %v697
    %v765 = vpop.f32.mrf.mxu0
    %v766 = vadd.f32 0.0, %v765
    %v767 = vpop.f32.mrf.mxu0
    %v768 = vadd.f32 0.0, %v767
    %769 = vdwg.mxu0
    %v770 = vadd.f32 %v693, %v766
    %v771 = vadd.f32 %v694, %v768
    %v772 = vmul.f32 %v770, 0.5
    %v773 = vmul.f32 %v771, 0.5
    %v774 = vtanh.pop %v772
    %v775 = vtanh.pop %v773
    %v776 = vmul.f32 %v774, 0.5
    %v777 = vmul.f32 %v775, 0.5
    %v778 = vadd.f32 %v776, 0.5
    %v779 = vadd.f32 %v777, 0.5
    %v780 = vtanh.pop %v771
    %v782 = vrot.slane %v680, 6
    %v784 = vmul.f32 %v778, %v782
    %786 = vrot.lane.b32.xlu0 %v780, 64
    %v787 = vpop.permute.xlu0 %786
    %v789 = vmul.f32 %v778, %v787
    %791 = vrot.lane.b32.xlu0 %v789, 64
    %v792 = vpop.permute.xlu0 %791
    %v794 = vadd.f32 %v784, %v792
    %v795 = vtanh.pop %v794
    %797 = vrot.lane.b32.xlu0 %v795, 64
    %v798 = vpop.permute.xlu0 %797
    %v800 = vmul.f32 %v779, %v798
    %v801 = vrot.slane %v225, 2
    %v802 = vrot.slane %v227, 2
    %v805 = vadd.f32 %v137, %v801
    %v806 = vadd.f32 %v139, %v802
    %v808 = vsel %vm243, %v800, 0
    %810 = vmatprep.subr.mxu0 0.0
    %811 = vmatpush1.msra.mxu0 0.0
    %812 = vmatprep.subr.mxu0 0.0
    %813 = vmatpush1.msra.mxu0 0.0
    %814 = vmatprep.subr.mxu0 0.0
    %815 = vmatpush1.msra.mxu0 0.0
    %816 = vmatprep.subr.mxu0 0.0
    %817 = vmatpush1.msra.mxu0 0.0
    %818 = vmatprep.subr.mxu0 0.0
    %819 = vmatpush1.msra.mxu0 0.0
    %820 = vmatprep.subr.mxu0 0.0
    %821 = vmatpush1.msra.mxu0 0.0
    %822 = vmatprep.subr.mxu0 0.0
    %823 = vmatpush1.msra.mxu0 0.0
    %824 = vmatprep.subr.mxu0 0.0
    %825 = vmatpush1.msra.mxu0 0.0
    %826 = vmatprep.subr.mxu0 %v49
    %827 = vmatpush1.msra.mxu0 %v48
    %828 = vmatprep.subr.mxu0 %v47
    %829 = vmatpush1.msra.mxu0 %v46
    %830 = vmatprep.subr.mxu0 %v45
    %831 = vmatpush1.msra.mxu0 %v44
    %832 = vmatprep.subr.mxu0 %v43
    %833 = vmatpush1.msra.mxu0 %v42
    %834 = vmatprep.subr.mxu0 %v41
    %835 = vmatpush1.msra.mxu0 %v40
    %836 = vmatprep.subr.mxu0 %v39
    %837 = vmatpush1.msra.mxu0 %v38
    %838 = vmatprep.subr.mxu0 %v37
    %839 = vmatpush1.msra.mxu0 %v36
    %840 = vmatprep.subr.mxu0 %v35
    %841 = vmatpush1.msra.mxu0 %v34
    %842 = vmatprep.subr.mxu0 0.0
    %843 = vmatpush2.msra.mxu0 0.0
    %844 = vmatprep.subr.mxu0 0.0
    %845 = vmatpush2.msra.mxu0 0.0
    %846 = vmatprep.subr.mxu0 0.0
    %847 = vmatpush2.msra.mxu0 0.0
    %848 = vmatprep.subr.mxu0 0.0
    %849 = vmatpush2.msra.mxu0 0.0
    %850 = vmatprep.subr.mxu0 0.0
    %851 = vmatpush2.msra.mxu0 0.0
    %852 = vmatprep.subr.mxu0 0.0
    %853 = vmatpush2.msra.mxu0 0.0
    %854 = vmatprep.subr.mxu0 0.0
    %855 = vmatpush2.msra.mxu0 0.0
    %856 = vmatprep.subr.mxu0 0.0
    %857 = vmatpush2.msra.mxu0 0.0
    %858 = vmatprep.subr.mxu0 0.0
    %859 = vmatpush2.msra.mxu0 0.0
    %860 = vmatprep.subr.mxu0 0.0
    %861 = vmatpush2.msra.mxu0 0.0
    %862 = vmatprep.subr.mxu0 0.0
    %863 = vmatpush2.msra.mxu0 0.0
    %864 = vmatprep.subr.mxu0 0.0
    %865 = vmatpush2.msra.mxu0 0.0
    %866 = vmatprep.subr.mxu0 0.0
    %867 = vmatpush2.msra.mxu0 0.0
    %868 = vmatprep.subr.mxu0 0.0
    %869 = vmatpush2.msra.mxu0 0.0
    %870 = vmatprep.subr.mxu0 0.0
    %871 = vmatpush2.msra.mxu0 0.0
    %872 = vmatprep.subr.mxu0 0.0
    %873 = vmatpush2.msra.mxu0 0.0
    %874 = vmatprep.mubr.f32.mxu0 0.0
    %875 = vmatmul.mubr.f32.gmra.mxu0 %v808
    %v876 = vpop.f32.mrf.mxu0
    %v877 = vadd.f32 0.0, %v876
    %v878 = vpop.f32.mrf.mxu0
    %v879 = vadd.f32 0.0, %v878
    %880 = vdwg.mxu0
    %v883 = vrot.slane %v877, 6
    %v884 = vrot.slane %v879, 6
    %v887 = vadd.f32 %v805, %v883
    %v888 = vadd.f32 %v806, %v884
    %v889 = vmul.f32 %v887, 0.5
    %v890 = vmul.f32 %v888, 0.5
    %v891 = vtanh.pop %v889
    %v892 = vtanh.pop %v890
    %v893 = vmul.f32 %v891, 0.5
    %v894 = vmul.f32 %v892, 0.5
    %v895 = vadd.f32 %v893, 0.5
    %v896 = vadd.f32 %v894, 0.5
    %v897 = vtanh.pop %v888
    %v899 = vrot.slane %v794, 6
    %v901 = vmul.f32 %v895, %v899
    %903 = vrot.lane.b32.xlu0 %v897, 64
    %v904 = vpop.permute.xlu0 %903
    %v906 = vmul.f32 %v895, %v904
    %908 = vrot.lane.b32.xlu0 %v906, 64
    %v909 = vpop.permute.xlu0 %908
    %v911 = vadd.f32 %v901, %v909
    %v912 = vtanh.pop %v911
    %914 = vrot.lane.b32.xlu0 %v912, 64
    %v915 = vpop.permute.xlu0 %914
    %v917 = vmul.f32 %v896, %v915
    %v919 = vrot.slane %v917, 2
    %v920 = vsel %vm243, %v919, 0
    %922 = vmatprep.subr.mxu0 0.0
    %923 = vmatpush1.msra.mxu0 0.0
    %924 = vmatprep.subr.mxu0 0.0
    %925 = vmatpush1.msra.mxu0 0.0
    %926 = vmatprep.subr.mxu0 0.0
    %927 = vmatpush1.msra.mxu0 0.0
    %928 = vmatprep.subr.mxu0 0.0
    %929 = vmatpush1.msra.mxu0 0.0
    %930 = vmatprep.subr.mxu0 0.0
    %931 = vmatpush1.msra.mxu0 0.0
    %932 = vmatprep.subr.mxu0 0.0
    %933 = vmatpush1.msra.mxu0 0.0
    %934 = vmatprep.subr.mxu0 0.0
    %935 = vmatpush1.msra.mxu0 0.0
    %936 = vmatprep.subr.mxu0 0.0
    %937 = vmatpush1.msra.mxu0 0.0
    %938 = vmatprep.subr.mxu0 %v49
    %939 = vmatpush1.msra.mxu0 %v48
    %940 = vmatprep.subr.mxu0 %v47
    %941 = vmatpush1.msra.mxu0 %v46
    %942 = vmatprep.subr.mxu0 %v45
    %943 = vmatpush1.msra.mxu0 %v44
    %944 = vmatprep.subr.mxu0 %v43
    %945 = vmatpush1.msra.mxu0 %v42
    %946 = vmatprep.subr.mxu0 %v41
    %947 = vmatpush1.msra.mxu0 %v40
    %948 = vmatprep.subr.mxu0 %v39
    %949 = vmatpush1.msra.mxu0 %v38
    %950 = vmatprep.subr.mxu0 %v37
    %951 = vmatpush1.msra.mxu0 %v36
    %952 = vmatprep.subr.mxu0 %v35
    %953 = vmatpush1.msra.mxu0 %v34
    %954 = vmatprep.subr.mxu0 0.0
    %955 = vmatpush2.msra.mxu0 0.0
    %956 = vmatprep.subr.mxu0 0.0
    %957 = vmatpush2.msra.mxu0 0.0
    %958 = vmatprep.subr.mxu0 0.0
    %959 = vmatpush2.msra.mxu0 0.0
    %960 = vmatprep.subr.mxu0 0.0
    %961 = vmatpush2.msra.mxu0 0.0
    %962 = vmatprep.subr.mxu0 0.0
    %963 = vmatpush2.msra.mxu0 0.0
    %964 = vmatprep.subr.mxu0 0.0
    %965 = vmatpush2.msra.mxu0 0.0
    %966 = vmatprep.subr.mxu0 0.0
    %967 = vmatpush2.msra.mxu0 0.0
    %968 = vmatprep.subr.mxu0 0.0
    %969 = vmatpush2.msra.mxu0 0.0
    %970 = vmatprep.subr.mxu0 0.0
    %971 = vmatpush2.msra.mxu0 0.0
    %972 = vmatprep.subr.mxu0 0.0
    %973 = vmatpush2.msra.mxu0 0.0
    %974 = vmatprep.subr.mxu0 0.0
    %975 = vmatpush2.msra.mxu0 0.0
    %976 = vmatprep.subr.mxu0 0.0
    %977 = vmatpush2.msra.mxu0 0.0
    %978 = vmatprep.subr.mxu0 0.0
    %979 = vmatpush2.msra.mxu0 0.0
    %980 = vmatprep.subr.mxu0 0.0
    %981 = vmatpush2.msra.mxu0 0.0
    %982 = vmatprep.subr.mxu0 0.0
    %983 = vmatpush2.msra.mxu0 0.0
    %984 = vmatprep.subr.mxu0 0.0
    %985 = vmatpush2.msra.mxu0 0.0
    %986 = vmatprep.mubr.f32.mxu0 0.0
    %987 = vmatmul.mubr.f32.gmra.mxu0 %v920
    %v988 = vpop.f32.mrf.mxu0
    %v989 = vadd.f32 0.0, %v988
    %v990 = vpop.f32.mrf.mxu0
    %v991 = vadd.f32 0.0, %v990
    %992 = vdwg.mxu0
    %v995 = vrot.slane %v989, 4
    %v996 = vrot.slane %v991, 4
    %v999 = vadd.f32 %v693, %v995
    %v1000 = vadd.f32 %v694, %v996
    %v1001 = vmul.f32 %v999, 0.5
    %v1002 = vmul.f32 %v1000, 0.5
    %v1003 = vtanh.pop %v1001
    %v1004 = vtanh.pop %v1002
    %v1005 = vmul.f32 %v1003, 0.5
    %v1006 = vmul.f32 %v1004, 0.5
    %v1007 = vadd.f32 %v1005, 0.5
    %v1008 = vadd.f32 %v1006, 0.5
    %v1009 = vtanh.pop %v1000
    %v1011 = vrot.slane %v911, 6
    %v1013 = vmul.f32 %v1007, %v1011
    %1015 = vrot.lane.b32.xlu0 %v1009, 64
    %v1016 = vpop.permute.xlu0 %1015
    %v1018 = vmul.f32 %v1007, %v1016
    %1020 = vrot.lane.b32.xlu0 %v1018, 64
    %v1021 = vpop.permute.xlu0 %1020
    %v1023 = vadd.f32 %v1013, %v1021
    %v1024 = vtanh.pop %v1023
    %1026 = vrot.lane.b32.xlu0 %v1024, 64
    %v1027 = vpop.permute.xlu0 %1026
    %v1029 = vmul.f32 %v1008, %v1027
    %v1031 = vrot.slane %v1029, 4
    %v1032 = vsel %vm243, %v1031, 0
    %1034 = vmatprep.subr.mxu0 0.0
    %1035 = vmatpush1.msra.mxu0 0.0
    %1036 = vmatprep.subr.mxu0 0.0
    %1037 = vmatpush1.msra.mxu0 0.0
    %1038 = vmatprep.subr.mxu0 0.0
    %1039 = vmatpush1.msra.mxu0 0.0
    %1040 = vmatprep.subr.mxu0 0.0
    %1041 = vmatpush1.msra.mxu0 0.0
    %1042 = vmatprep.subr.mxu0 0.0
    %1043 = vmatpush1.msra.mxu0 0.0
    %1044 = vmatprep.subr.mxu0 0.0
    %1045 = vmatpush1.msra.mxu0 0.0
    %1046 = vmatprep.subr.mxu0 0.0
    %1047 = vmatpush1.msra.mxu0 0.0
    %1048 = vmatprep.subr.mxu0 0.0
    %1049 = vmatpush1.msra.mxu0 0.0
    %1050 = vmatprep.subr.mxu0 %v49
    %1051 = vmatpush1.msra.mxu0 %v48
    %1052 = vmatprep.subr.mxu0 %v47
    %1053 = vmatpush1.msra.mxu0 %v46
    %1054 = vmatprep.subr.mxu0 %v45
    %1055 = vmatpush1.msra.mxu0 %v44
    %1056 = vmatprep.subr.mxu0 %v43
    %1057 = vmatpush1.msra.mxu0 %v42
    %1058 = vmatprep.subr.mxu0 %v41
    %1059 = vmatpush1.msra.mxu0 %v40
    %1060 = vmatprep.subr.mxu0 %v39
    %1061 = vmatpush1.msra.mxu0 %v38
    %1062 = vmatprep.subr.mxu0 %v37
    %1063 = vmatpush1.msra.mxu0 %v36
    %1064 = vmatprep.subr.mxu0 %v35
    %1065 = vmatpush1.msra.mxu0 %v34
    %1066 = vmatprep.subr.mxu0 0.0
    %1067 = vmatpush2.msra.mxu0 0.0
    %1068 = vmatprep.subr.mxu0 0.0
    %1069 = vmatpush2.msra.mxu0 0.0
    %1070 = vmatprep.subr.mxu0 0.0
    %1071 = vmatpush2.msra.mxu0 0.0
    %1072 = vmatprep.subr.mxu0 0.0
    %1073 = vmatpush2.msra.mxu0 0.0
    %1074 = vmatprep.subr.mxu0 0.0
    %1075 = vmatpush2.msra.mxu0 0.0
    %1076 = vmatprep.subr.mxu0 0.0
    %1077 = vmatpush2.msra.mxu0 0.0
    %1078 = vmatprep.subr.mxu0 0.0
    %1079 = vmatpush2.msra.mxu0 0.0
    %1080 = vmatprep.subr.mxu0 0.0
    %1081 = vmatpush2.msra.mxu0 0.0
    %1082 = vmatprep.subr.mxu0 0.0
    %1083 = vmatpush2.msra.mxu0 0.0
    %1084 = vmatprep.subr.mxu0 0.0
    %1085 = vmatpush2.msra.mxu0 0.0
    %1086 = vmatprep.subr.mxu0 0.0
    %1087 = vmatpush2.msra.mxu0 0.0
    %1088 = vmatprep.subr.mxu0 0.0
    %1089 = vmatpush2.msra.mxu0 0.0
    %1090 = vmatprep.subr.mxu0 0.0
    %1091 = vmatpush2.msra.mxu0 0.0
    %1092 = vmatprep.subr.mxu0 0.0
    %1093 = vmatpush2.msra.mxu0 0.0
    %1094 = vmatprep.subr.mxu0 0.0
    %1095 = vmatpush2.msra.mxu0 0.0
    %1096 = vmatprep.subr.mxu0 0.0
    %1097 = vmatpush2.msra.mxu0 0.0
    %1098 = vmatprep.mubr.f32.mxu0 0.0
    %1099 = vmatmul.mubr.f32.gmra.mxu0 %v1032
    %v1100 = vpop.f32.mrf.mxu0
    %v1101 = vadd.f32 0.0, %v1100
    %v1102 = vpop.f32.mrf.mxu0
    %v1103 = vadd.f32 0.0, %v1102
    %1104 = vdwg.mxu0
    %v1107 = vrot.slane %v1101, 2
    %v1108 = vrot.slane %v1103, 2
    %v1111 = vadd.f32 %v805, %v1107
    %v1112 = vadd.f32 %v806, %v1108
    %v1113 = vmul.f32 %v1111, 0.5
    %v1114 = vmul.f32 %v1112, 0.5
    %v1115 = vtanh.pop %v1113
    %v1116 = vtanh.pop %v1114
    %v1117 = vmul.f32 %v1115, 0.5
    %v1118 = vmul.f32 %v1116, 0.5
    %v1119 = vadd.f32 %v1117, 0.5
    %v1120 = vadd.f32 %v1118, 0.5
    %v1121 = vtanh.pop %v1112
    %v1123 = vrot.slane %v1023, 6
    %v1125 = vmul.f32 %v1119, %v1123
    %1127 = vrot.lane.b32.xlu0 %v1121, 64
    %v1128 = vpop.permute.xlu0 %1127
    %v1130 = vmul.f32 %v1119, %v1128
    %1132 = vrot.lane.b32.xlu0 %v1130, 64
    %v1133 = vpop.permute.xlu0 %1132
    %v1135 = vadd.f32 %v1125, %v1133
    %v1136 = vtanh.pop %v1135
    %1138 = vrot.lane.b32.xlu0 %v1136, 64
    %v1139 = vpop.permute.xlu0 %1138
    %v1141 = vmul.f32 %v1120, %v1139
    %v1142 = vld [vmem:[#allocation2 + $0xb0] sm:$0xff]
    %v1143 = vld [vmem:[#allocation2 + $0xc0] sm:$0xff]
    %v1144 = vld [vmem:[#allocation2 + $0xd0] sm:$0xff]
    %v1145 = vld [vmem:[#allocation2 + $0xe0] sm:$0xff]
    %v1146 = vld [vmem:[#allocation2 + $0xf0] sm:$0xf]
    %v1147 = vld [vmem:[#allocation2 + $0x100] ss:$0 sm:$0xff]
    %v1148 = vld [vmem:[#allocation2 + $0x110] sm:$0xff]
    %v1149 = vld [vmem:[#allocation2 + $0x120] sm:$0xff]
    %v1150 = vld [vmem:[#allocation2 + $0x130] sm:$0xff]
    %v1151 = vld [vmem:[#allocation2 + $0x140] sm:$0xff]
    %v1152 = vld [vmem:[#allocation2 + $0x150] sm:$0xff]
    %v1153 = vld [vmem:[#allocation2 + $0x160] sm:$0xff]
    %v1154 = vld [vmem:[#allocation2 + $0x170] sm:$0xff]
    %v1155 = vld [vmem:[#allocation2 + $0x180] sm:$0xff]
    %v1156 = vld [vmem:[#allocation2 + $0x190] ss:$0 sm:$0xff]
    %v1157 = vld [vmem:[#allocation2 + $0x1a0] ss:$0 sm:$0xff]
    %v1158 = vlaneseq
    %v1159 = vand.u32 %v1158, 127
    %1161 = vrot.lane.b32.xlu0 %v1141, 4
    %v1162 = vpop.permute.xlu0 %1161
    %v1164 = vsel %vm50, %v27, %v1162
    %v1166 = vrot.slane %v1164, 6
    %vm1167 = vcmask 293888
    %v1168 = vsel %vm1167, %v1166, 0
    %v1171 = vsel %vm57, %v1146, 0
    %1173 = vmatprep.subr.mxu0 0.0
    %1174 = vmatpush1.msra.mxu0 0.0
    %1175 = vmatprep.subr.mxu0 0.0
    %1176 = vmatpush1.msra.mxu0 0.0
    %1177 = vmatprep.subr.mxu0 0.0
    %1178 = vmatpush1.msra.mxu0 0.0
    %1179 = vmatprep.subr.mxu0 0.0
    %1180 = vmatpush1.msra.mxu0 0.0
    %1181 = vmatprep.subr.mxu0 0.0
    %1182 = vmatpush1.msra.mxu0 0.0
    %1183 = vmatprep.subr.mxu0 0.0
    %1184 = vmatpush1.msra.mxu0 0.0
    %1185 = vmatprep.subr.mxu0 0.0
    %1186 = vmatpush1.msra.mxu0 0.0
    %1187 = vmatprep.subr.mxu0 0.0
    %1188 = vmatpush1.msra.mxu0 0.0
    %1189 = vmatprep.subr.mxu0 0.0
    %1190 = vmatpush1.msra.mxu0 0.0
    %1191 = vmatprep.subr.mxu0 0.0
    %1192 = vmatpush1.msra.mxu0 0.0
    %1193 = vmatprep.subr.mxu0 0.0
    %1194 = vmatpush1.msra.mxu0 0.0
    %1195 = vmatprep.subr.mxu0 0.0
    %1196 = vmatpush1.msra.mxu0 %v1171
    %1197 = vmatprep.subr.mxu0 0.0
    %1198 = vmatpush1.msra.mxu0 %v1145
    %1199 = vmatprep.subr.mxu0 0.0
    %1200 = vmatpush1.msra.mxu0 %v1144
    %1201 = vmatprep.subr.mxu0 0.0
    %1202 = vmatpush1.msra.mxu0 %v1143
    %1203 = vmatprep.subr.mxu0 0.0
    %1204 = vmatpush1.msra.mxu0 %v1142
    %1205 = vmatprep.subr.mxu0 0.0
    %1206 = vmatpush2.msra.mxu0 0.0
    %1207 = vmatprep.subr.mxu0 0.0
    %1208 = vmatpush2.msra.mxu0 0.0
    %1209 = vmatprep.subr.mxu0 0.0
    %1210 = vmatpush2.msra.mxu0 0.0
    %1211 = vmatprep.subr.mxu0 0.0
    %1212 = vmatpush2.msra.mxu0 0.0
    %1213 = vmatprep.subr.mxu0 0.0
    %1214 = vmatpush2.msra.mxu0 0.0
    %1215 = vmatprep.subr.mxu0 0.0
    %1216 = vmatpush2.msra.mxu0 0.0
    %1217 = vmatprep.subr.mxu0 0.0
    %1218 = vmatpush2.msra.mxu0 0.0
    %1219 = vmatprep.subr.mxu0 0.0
    %1220 = vmatpush2.msra.mxu0 0.0
    %1221 = vmatprep.subr.mxu0 0.0
    %1222 = vmatpush2.msra.mxu0 0.0
    %1223 = vmatprep.subr.mxu0 0.0
    %1224 = vmatpush2.msra.mxu0 0.0
    %1225 = vmatprep.subr.mxu0 0.0
    %1226 = vmatpush2.msra.mxu0 0.0
    %1227 = vmatprep.subr.mxu0 0.0
    %1228 = vmatpush2.msra.mxu0 0.0
    %1229 = vmatprep.subr.mxu0 0.0
    %1230 = vmatpush2.msra.mxu0 0.0
    %1231 = vmatprep.subr.mxu0 0.0
    %1232 = vmatpush2.msra.mxu0 0.0
    %1233 = vmatprep.subr.mxu0 0.0
    %1234 = vmatpush2.msra.mxu0 0.0
    %1235 = vmatprep.subr.mxu0 0.0
    %1236 = vmatpush2.msra.mxu0 0.0
    %1237 = vmatprep.mubr.f32.mxu0 0.0
    %1238 = vmatmul.mubr.f32.gmra.mxu0 %v1168
    %v1239 = vpop.f32.mrf.mxu0
    %v1240 = vadd.f32 %v1147, %v1239
    %v1241 = vpop.f32.mrf.mxu0
    %1242 = vdwg.mxu0
    %v1243 = vmul.f32 %v1240, 0.5
    %v1244 = vtanh.pop %v1243
    %v1245 = vmul.f32 %v1244, 0.5
    %v1246 = vadd.f32 %v1245, 0.5
    %v1247 = vtanh.pop %v1240
    %v1249 = vrot.slane %v1135, 6
    %1250 = vrot.lane.b32.xlu0 %v1249, 96
    %v1251 = vpop.permute.xlu0 %1250
    %v1253 = vmul.f32 %v1246, %v1251
    %1255 = vrot.lane.b32.xlu0 %v1247, 32
    %v1256 = vpop.permute.xlu0 %1255
    %v1258 = vmul.f32 %v1246, %v1256
    %1260 = vrot.lane.b32.xlu0 %v1258, 32
    %v1261 = vpop.permute.xlu0 %1260
    %v1263 = vadd.f32 %v1253, %v1261
    %v1264 = vtanh.pop %v1263
    %1266 = vrot.lane.b32.xlu0 %v1264, 32
    %v1267 = vpop.permute.xlu0 %1266
    %v1269 = vmul.f32 %v1246, %v1267
    %1271 = vrot.lane.b32.xlu0 %v1269, 64
    %v1272 = vpop.permute.xlu0 %1271
    %v1274 = vrot.slane %v1141, 6
    %vm1276 = vcmask 261120
    %v1277 = vsel %vm1276, %v1272, %v1274
    %v1279 = vsel %vm243, %v1277, 0
    %1281 = vmatprep.subr.mxu0 0.0
    %1282 = vmatpush1.msra.mxu0 0.0
    %1283 = vmatprep.subr.mxu0 0.0
    %1284 = vmatpush1.msra.mxu0 0.0
    %1285 = vmatprep.subr.mxu0 0.0
    %1286 = vmatpush1.msra.mxu0 0.0
    %1287 = vmatprep.subr.mxu0 0.0
    %1288 = vmatpush1.msra.mxu0 0.0
    %1289 = vmatprep.subr.mxu0 0.0
    %1290 = vmatpush1.msra.mxu0 0.0
    %1291 = vmatprep.subr.mxu0 0.0
    %1292 = vmatpush1.msra.mxu0 0.0
    %1293 = vmatprep.subr.mxu0 0.0
    %1294 = vmatpush1.msra.mxu0 0.0
    %1295 = vmatprep.subr.mxu0 0.0
    %1296 = vmatpush1.msra.mxu0 0.0
    %1297 = vmatprep.subr.mxu0 0.0
    %1298 = vmatpush1.msra.mxu0 %v1155
    %1299 = vmatprep.subr.mxu0 0.0
    %1300 = vmatpush1.msra.mxu0 %v1154
    %1301 = vmatprep.subr.mxu0 0.0
    %1302 = vmatpush1.msra.mxu0 %v1153
    %1303 = vmatprep.subr.mxu0 0.0
    %1304 = vmatpush1.msra.mxu0 %v1152
    %1305 = vmatprep.subr.mxu0 0.0
    %1306 = vmatpush1.msra.mxu0 %v1151
    %1307 = vmatprep.subr.mxu0 0.0
    %1308 = vmatpush1.msra.mxu0 %v1150
    %1309 = vmatprep.subr.mxu0 0.0
    %1310 = vmatpush1.msra.mxu0 %v1149
    %1311 = vmatprep.subr.mxu0 0.0
    %1312 = vmatpush1.msra.mxu0 %v1148
    %1313 = vmatprep.subr.mxu0 0.0
    %1314 = vmatpush2.msra.mxu0 0.0
    %1315 = vmatprep.subr.mxu0 0.0
    %1316 = vmatpush2.msra.mxu0 0.0
    %1317 = vmatprep.subr.mxu0 0.0
    %1318 = vmatpush2.msra.mxu0 0.0
    %1319 = vmatprep.subr.mxu0 0.0
    %1320 = vmatpush2.msra.mxu0 0.0
    %1321 = vmatprep.subr.mxu0 0.0
    %1322 = vmatpush2.msra.mxu0 0.0
    %1323 = vmatprep.subr.mxu0 0.0
    %1324 = vmatpush2.msra.mxu0 0.0
    %1325 = vmatprep.subr.mxu0 0.0
    %1326 = vmatpush2.msra.mxu0 0.0
    %1327 = vmatprep.subr.mxu0 0.0
    %1328 = vmatpush2.msra.mxu0 0.0
    %1329 = vmatprep.subr.mxu0 0.0
    %1330 = vmatpush2.msra.mxu0 0.0
    %1331 = vmatprep.subr.mxu0 0.0
    %1332 = vmatpush2.msra.mxu0 0.0
    %1333 = vmatprep.subr.mxu0 0.0
    %1334 = vmatpush2.msra.mxu0 0.0
    %1335 = vmatprep.subr.mxu0 0.0
    %1336 = vmatpush2.msra.mxu0 0.0
    %1337 = vmatprep.subr.mxu0 0.0
    %1338 = vmatpush2.msra.mxu0 0.0
    %1339 = vmatprep.subr.mxu0 0.0
    %1340 = vmatpush2.msra.mxu0 0.0
    %1341 = vmatprep.subr.mxu0 0.0
    %1342 = vmatpush2.msra.mxu0 0.0
    %1343 = vmatprep.subr.mxu0 0.0
    %1344 = vmatpush2.msra.mxu0 0.0
    %1345 = vmatprep.mubr.f32.mxu0 0.0
    %1346 = vmatmul.mubr.f32.gmra.mxu0 %v1279
    %v1347 = vpop.f32.mrf.mxu0
    %v1348 = vadd.f32 %v1156, %v1347
    %v1349 = vpop.f32.mrf.mxu0
    %1350 = vdwg.mxu0
    %v1351 = vmul.f32 %v1348, 0.5
    %v1352 = vtanh.pop %v1351
    %v1353 = vmul.f32 %v1352, 0.5
    %v1354 = vadd.f32 %v1353, 0.5
    %v1355 = vtanh.pop %v1348
    %1356 = vrot.lane.b32.xlu0 %v1249, 64
    %v1357 = vpop.permute.xlu0 %1356
    %v1359 = vmul.f32 %v1354, %v1357
    %1361 = vrot.lane.b32.xlu0 %v1355, 32
    %v1362 = vpop.permute.xlu0 %1361
    %v1364 = vmul.f32 %v1354, %v1362
    %1366 = vrot.lane.b32.xlu0 %v1364, 32
    %v1367 = vpop.permute.xlu0 %1366
    %v1369 = vadd.f32 %v1359, %v1367
    %v1370 = vtanh.pop %v1369
    %1372 = vrot.lane.b32.xlu0 %v1370, 32
    %v1373 = vpop.permute.xlu0 %1372
    %v1375 = vmul.f32 %v1354, %v1373
    %1377 = vrot.lane.b32.xlu0 %v1157, 64
    %v1378 = vpop.permute.xlu0 %1377
    %v1380 = vmul.f32 %v1375, %v1378
    %1382 = vrot.lane.b32.xlu0 %v1380, 64
    %v1383 = vpop.permute.xlu0 %1382
    %vm1385 = vcmask 254976
    %v1386 = vsel %vm1385, %v1383, 0.0
    %1387 = vadd.xlane.f32.xlu0 %v1386
    %v1388 = vpop.xlane.xlu0 %1387
    %v1389 = vadd.f32 %v1388, %v1157
    %vm1390 = vcmp.eq.s32.totalorder %v1159, 0
    %1392 = vset.pattern.permute.xlu0 32
    %1393 = vperm.xlu0 %1392, %v1389
    %v1394 = vpop.permute.xlu0 %1393
    %v1396 = vsel %vm1390, %v1394, 0.0
    %v1397 = vadd.f32 %v1396, 0.0
    %v1398 = vrot.slane %v1389, 2
    %1399 = vrot.lane.b32.xlu0 %v1398, 96
    %v1400 = vpop.permute.xlu0 %1399
    %v1402 = vsub.f32 %v27, %v1400
    %1404 = vrot.lane.b32.xlu0 %v1402, 1
    %v1405 = vpop.permute.xlu0 %1404
    %v1407 = vsub.f32 %v27, %v1405
    %vm1408 = vcmp.eq.s32.totalorder %v1159, 1
    %1409 = vset.pattern.permute.xlu0 0
    %1410 = vperm.xlu0 %1409, %v1402
    %v1411 = vpop.permute.xlu0 %1410
    %v1413 = vsel %vm1408, %v1411, 0.0
    %v1415 = vrot.slane %v1413, 6
    %v1417 = vadd.f32 %v1396, %v1415
    %vm1418 = vcmp.eq.s32.totalorder %v1159, 2
    %1420 = vset.pattern.permute.xlu0 1
    %1421 = vperm.xlu0 %1420, %v1407
    %v1422 = vpop.permute.xlu0 %1421
    %v1424 = vsel %vm1418, %v1422, 0.0
    %v1426 = vrot.slane %v1424, 6
    %v1428 = vadd.f32 %v1417, %v1426
    %1429 = vrot.lane.b32.xlu0 %v1269, 68
    %v1430 = vpop.permute.xlu0 %1429
    %v1432 = vsel %vm50, %v1428, %v1430
    %v1434 = vsel %vm1167, %v1432, 0
    %1436 = vmatprep.subr.mxu0 0.0
    %1437 = vmatpush1.msra.mxu0 0.0
    %1438 = vmatprep.subr.mxu0 0.0
    %1439 = vmatpush1.msra.mxu0 0.0
    %1440 = vmatprep.subr.mxu0 0.0
    %1441 = vmatpush1.msra.mxu0 0.0
    %1442 = vmatprep.subr.mxu0 0.0
    %1443 = vmatpush1.msra.mxu0 0.0
    %1444 = vmatprep.subr.mxu0 0.0
    %1445 = vmatpush1.msra.mxu0 0.0
    %1446 = vmatprep.subr.mxu0 0.0
    %1447 = vmatpush1.msra.mxu0 0.0
    %1448 = vmatprep.subr.mxu0 0.0
    %1449 = vmatpush1.msra.mxu0 0.0
    %1450 = vmatprep.subr.mxu0 0.0
    %1451 = vmatpush1.msra.mxu0 0.0
    %1452 = vmatprep.subr.mxu0 0.0
    %1453 = vmatpush1.msra.mxu0 0.0
    %1454 = vmatprep.subr.mxu0 0.0
    %1455 = vmatpush1.msra.mxu0 0.0
    %1456 = vmatprep.subr.mxu0 0.0
    %1457 = vmatpush1.msra.mxu0 0.0
    %1458 = vmatprep.subr.mxu0 0.0
    %1459 = vmatpush1.msra.mxu0 %v1171
    %1460 = vmatprep.subr.mxu0 0.0
    %1461 = vmatpush1.msra.mxu0 %v1145
    %1462 = vmatprep.subr.mxu0 0.0
    %1463 = vmatpush1.msra.mxu0 %v1144
    %1464 = vmatprep.subr.mxu0 0.0
    %1465 = vmatpush1.msra.mxu0 %v1143
    %1466 = vmatprep.subr.mxu0 0.0
    %1467 = vmatpush1.msra.mxu0 %v1142
    %1468 = vmatprep.subr.mxu0 0.0
    %1469 = vmatpush2.msra.mxu0 0.0
    %1470 = vmatprep.subr.mxu0 0.0
    %1471 = vmatpush2.msra.mxu0 0.0
    %1472 = vmatprep.subr.mxu0 0.0
    %1473 = vmatpush2.msra.mxu0 0.0
    %1474 = vmatprep.subr.mxu0 0.0
    %1475 = vmatpush2.msra.mxu0 0.0
    %1476 = vmatprep.subr.mxu0 0.0
    %1477 = vmatpush2.msra.mxu0 0.0
    %1478 = vmatprep.subr.mxu0 0.0
    %1479 = vmatpush2.msra.mxu0 0.0
    %1480 = vmatprep.subr.mxu0 0.0
    %1481 = vmatpush2.msra.mxu0 0.0
    %1482 = vmatprep.subr.mxu0 0.0
    %1483 = vmatpush2.msra.mxu0 0.0
    %1484 = vmatprep.subr.mxu0 0.0
    %1485 = vmatpush2.msra.mxu0 0.0
    %1486 = vmatprep.subr.mxu0 0.0
    %1487 = vmatpush2.msra.mxu0 0.0
    %1488 = vmatprep.subr.mxu0 0.0
    %1489 = vmatpush2.msra.mxu0 0.0
    %1490 = vmatprep.subr.mxu0 0.0
    %1491 = vmatpush2.msra.mxu0 0.0
    %1492 = vmatprep.subr.mxu0 0.0
    %1493 = vmatpush2.msra.mxu0 0.0
    %1494 = vmatprep.subr.mxu0 0.0
    %1495 = vmatpush2.msra.mxu0 0.0
    %1496 = vmatprep.subr.mxu0 0.0
    %1497 = vmatpush2.msra.mxu0 0.0
    %1498 = vmatprep.subr.mxu0 0.0
    %1499 = vmatpush2.msra.mxu0 0.0
    %1500 = vmatprep.mubr.f32.mxu0 0.0
    %1501 = vmatmul.mubr.f32.gmra.mxu0 %v1434
    %v1502 = vpop.f32.mrf.mxu0
    %v1503 = vadd.f32 %v1147, %v1502
    %v1504 = vpop.f32.mrf.mxu0
    %1505 = vdwg.mxu0
    %v1506 = vmul.f32 %v1503, 0.5
    %v1507 = vtanh.pop %v1506
    %v1508 = vmul.f32 %v1507, 0.5
    %v1509 = vadd.f32 %v1508, 0.5
    %v1510 = vtanh.pop %v1503
    %v1511 = vmul.f32 %v1509, %v1263
    %1513 = vrot.lane.b32.xlu0 %v1510, 32
    %v1514 = vpop.permute.xlu0 %1513
    %v1516 = vmul.f32 %v1509, %v1514
    %1518 = vrot.lane.b32.xlu0 %v1516, 32
    %v1519 = vpop.permute.xlu0 %1518
    %v1521 = vadd.f32 %v1511, %v1519
    %v1522 = vtanh.pop %v1521
    %1524 = vrot.lane.b32.xlu0 %v1522, 32
    %v1525 = vpop.permute.xlu0 %1524
    %v1527 = vmul.f32 %v1509, %v1525
    %1529 = vrot.lane.b32.xlu0 %v1527, 64
    %v1530 = vpop.permute.xlu0 %1529
    %1533 = vrot.lane.b32.xlu0 %v1375, 96
    %v1534 = vpop.permute.xlu0 %1533
    %v1536 = vsel %vm1276, %v1530, %v1534
    %v1538 = vsel %vm243, %v1536, 0
    %1540 = vmatprep.subr.mxu0 0.0
    %1541 = vmatpush1.msra.mxu0 0.0
    %1542 = vmatprep.subr.mxu0 0.0
    %1543 = vmatpush1.msra.mxu0 0.0
    %1544 = vmatprep.subr.mxu0 0.0
    %1545 = vmatpush1.msra.mxu0 0.0
    %1546 = vmatprep.subr.mxu0 0.0
    %1547 = vmatpush1.msra.mxu0 0.0
    %1548 = vmatprep.subr.mxu0 0.0
    %1549 = vmatpush1.msra.mxu0 0.0
    %1550 = vmatprep.subr.mxu0 0.0
    %1551 = vmatpush1.msra.mxu0 0.0
    %1552 = vmatprep.subr.mxu0 0.0
    %1553 = vmatpush1.msra.mxu0 0.0
    %1554 = vmatprep.subr.mxu0 0.0
    %1555 = vmatpush1.msra.mxu0 0.0
    %1556 = vmatprep.subr.mxu0 0.0
    %1557 = vmatpush1.msra.mxu0 %v1155
    %1558 = vmatprep.subr.mxu0 0.0
    %1559 = vmatpush1.msra.mxu0 %v1154
    %1560 = vmatprep.subr.mxu0 0.0
    %1561 = vmatpush1.msra.mxu0 %v1153
    %1562 = vmatprep.subr.mxu0 0.0
    %1563 = vmatpush1.msra.mxu0 %v1152
    %1564 = vmatprep.subr.mxu0 0.0
    %1565 = vmatpush1.msra.mxu0 %v1151
    %1566 = vmatprep.subr.mxu0 0.0
    %1567 = vmatpush1.msra.mxu0 %v1150
    %1568 = vmatprep.subr.mxu0 0.0
    %1569 = vmatpush1.msra.mxu0 %v1149
    %1570 = vmatprep.subr.mxu0 0.0
    %1571 = vmatpush1.msra.mxu0 %v1148
    %1572 = vmatprep.subr.mxu0 0.0
    %1573 = vmatpush2.msra.mxu0 0.0
    %1574 = vmatprep.subr.mxu0 0.0
    %1575 = vmatpush2.msra.mxu0 0.0
    %1576 = vmatprep.subr.mxu0 0.0
    %1577 = vmatpush2.msra.mxu0 0.0
    %1578 = vmatprep.subr.mxu0 0.0
    %1579 = vmatpush2.msra.mxu0 0.0
    %1580 = vmatprep.subr.mxu0 0.0
    %1581 = vmatpush2.msra.mxu0 0.0
    %1582 = vmatprep.subr.mxu0 0.0
    %1583 = vmatpush2.msra.mxu0 0.0
    %1584 = vmatprep.subr.mxu0 0.0
    %1585 = vmatpush2.msra.mxu0 0.0
    %1586 = vmatprep.subr.mxu0 0.0
    %1587 = vmatpush2.msra.mxu0 0.0
    %1588 = vmatprep.subr.mxu0 0.0
    %1589 = vmatpush2.msra.mxu0 0.0
    %1590 = vmatprep.subr.mxu0 0.0
    %1591 = vmatpush2.msra.mxu0 0.0
    %1592 = vmatprep.subr.mxu0 0.0
    %1593 = vmatpush2.msra.mxu0 0.0
    %1594 = vmatprep.subr.mxu0 0.0
    %1595 = vmatpush2.msra.mxu0 0.0
    %1596 = vmatprep.subr.mxu0 0.0
    %1597 = vmatpush2.msra.mxu0 0.0
    %1598 = vmatprep.subr.mxu0 0.0
    %1599 = vmatpush2.msra.mxu0 0.0
    %1600 = vmatprep.subr.mxu0 0.0
    %1601 = vmatpush2.msra.mxu0 0.0
    %1602 = vmatprep.subr.mxu0 0.0
    %1603 = vmatpush2.msra.mxu0 0.0
    %1604 = vmatprep.mubr.f32.mxu0 0.0
    %1605 = vmatmul.mubr.f32.gmra.mxu0 %v1538
    %v1606 = vpop.f32.mrf.mxu0
    %v1607 = vadd.f32 %v1156, %v1606
    %v1608 = vpop.f32.mrf.mxu0
    %1609 = vdwg.mxu0
    %v1610 = vmul.f32 %v1607, 0.5
    %v1611 = vtanh.pop %v1610
    %v1612 = vmul.f32 %v1611, 0.5
    %v1613 = vadd.f32 %v1612, 0.5
    %v1614 = vtanh.pop %v1607
    %v1615 = vmul.f32 %v1613, %v1369
    %1617 = vrot.lane.b32.xlu0 %v1614, 32
    %v1618 = vpop.permute.xlu0 %1617
    %v1620 = vmul.f32 %v1613, %v1618
    %1622 = vrot.lane.b32.xlu0 %v1620, 32
    %v1623 = vpop.permute.xlu0 %1622
    %v1625 = vadd.f32 %v1615, %v1623
    %v1626 = vtanh.pop %v1625
    %1628 = vrot.lane.b32.xlu0 %v1626, 32
    %v1629 = vpop.permute.xlu0 %1628
    %v1631 = vmul.f32 %v1613, %v1629
    %v1632 = vmul.f32 %v1631, %v1378
    %1634 = vrot.lane.b32.xlu0 %v1632, 64
    %v1635 = vpop.permute.xlu0 %1634
    %v1637 = vsel %vm1385, %v1635, 0.0
    %1638 = vadd.xlane.f32.xlu0 %v1637
    %v1639 = vpop.xlane.xlu0 %1638
    %v1640 = vadd.f32 %v1639, %v1157
    %1642 = vset.pattern.permute.xlu0 32
    %1643 = vperm.xlu0 %1642, %v1640
    %v1644 = vpop.permute.xlu0 %1643
    %v1646 = vsel %vm1408, %v1644, 0.0
    %v1647 = vadd.f32 %v1397, %v1646
    %1648 = vrot.lane.b32.xlu0 %v1640, 96
    %v1649 = vpop.permute.xlu0 %1648
    %v1651 = vsub.f32 %v1428, %v1649
    %1653 = vrot.lane.b32.xlu0 %v1651, 1
    %v1654 = vpop.permute.xlu0 %1653
    %v1656 = vsub.f32 %v1428, %v1654
    %v1657 = vsel %vm1390, %v1644, 0.0
    %1658 = vset.pattern.permute.xlu0 0
    %1659 = vperm.xlu0 %1658, %v1651
    %v1660 = vpop.permute.xlu0 %1659
    %v1662 = vsel %vm1408, %v1660, 0.0
    %v1663 = vadd.f32 %v1657, %v1662
    %1665 = vset.pattern.permute.xlu0 1
    %1666 = vperm.xlu0 %1665, %v1656
    %v1667 = vpop.permute.xlu0 %1666
    %v1669 = vsel %vm1418, %v1667, 0.0
    %v1670 = vadd.f32 %v1663, %v1669
    %1671 = vrot.lane.b32.xlu0 %v1527, 68
    %v1672 = vpop.permute.xlu0 %1671
    %v1674 = vsel %vm50, %v1670, %v1672
    %v1676 = vsel %vm1167, %v1674, 0
    %1678 = vmatprep.subr.mxu0 0.0
    %1679 = vmatpush1.msra.mxu0 0.0
    %1680 = vmatprep.subr.mxu0 0.0
    %1681 = vmatpush1.msra.mxu0 0.0
    %1682 = vmatprep.subr.mxu0 0.0
    %1683 = vmatpush1.msra.mxu0 0.0
    %1684 = vmatprep.subr.mxu0 0.0
    %1685 = vmatpush1.msra.mxu0 0.0
    %1686 = vmatprep.subr.mxu0 0.0
    %1687 = vmatpush1.msra.mxu0 0.0
    %1688 = vmatprep.subr.mxu0 0.0
    %1689 = vmatpush1.msra.mxu0 0.0
    %1690 = vmatprep.subr.mxu0 0.0
    %1691 = vmatpush1.msra.mxu0 0.0
    %1692 = vmatprep.subr.mxu0 0.0
    %1693 = vmatpush1.msra.mxu0 0.0
    %1694 = vmatprep.subr.mxu0 0.0
    %1695 = vmatpush1.msra.mxu0 0.0
    %1696 = vmatprep.subr.mxu0 0.0
    %1697 = vmatpush1.msra.mxu0 0.0
    %1698 = vmatprep.subr.mxu0 0.0
    %1699 = vmatpush1.msra.mxu0 0.0
    %1700 = vmatprep.subr.mxu0 0.0
    %1701 = vmatpush1.msra.mxu0 %v1171
    %1702 = vmatprep.subr.mxu0 0.0
    %1703 = vmatpush1.msra.mxu0 %v1145
    %1704 = vmatprep.subr.mxu0 0.0
    %1705 = vmatpush1.msra.mxu0 %v1144
    %1706 = vmatprep.subr.mxu0 0.0
    %1707 = vmatpush1.msra.mxu0 %v1143
    %1708 = vmatprep.subr.mxu0 0.0
    %1709 = vmatpush1.msra.mxu0 %v1142
    %1710 = vmatprep.subr.mxu0 0.0
    %1711 = vmatpush2.msra.mxu0 0.0
    %1712 = vmatprep.subr.mxu0 0.0
    %1713 = vmatpush2.msra.mxu0 0.0
    %1714 = vmatprep.subr.mxu0 0.0
    %1715 = vmatpush2.msra.mxu0 0.0
    %1716 = vmatprep.subr.mxu0 0.0
    %1717 = vmatpush2.msra.mxu0 0.0
    %1718 = vmatprep.subr.mxu0 0.0
    %1719 = vmatpush2.msra.mxu0 0.0
    %1720 = vmatprep.subr.mxu0 0.0
    %1721 = vmatpush2.msra.mxu0 0.0
    %1722 = vmatprep.subr.mxu0 0.0
    %1723 = vmatpush2.msra.mxu0 0.0
    %1724 = vmatprep.subr.mxu0 0.0
    %1725 = vmatpush2.msra.mxu0 0.0
    %1726 = vmatprep.subr.mxu0 0.0
    %1727 = vmatpush2.msra.mxu0 0.0
    %1728 = vmatprep.subr.mxu0 0.0
    %1729 = vmatpush2.msra.mxu0 0.0
    %1730 = vmatprep.subr.mxu0 0.0
    %1731 = vmatpush2.msra.mxu0 0.0
    %1732 = vmatprep.subr.mxu0 0.0
    %1733 = vmatpush2.msra.mxu0 0.0
    %1734 = vmatprep.subr.mxu0 0.0
    %1735 = vmatpush2.msra.mxu0 0.0
    %1736 = vmatprep.subr.mxu0 0.0
    %1737 = vmatpush2.msra.mxu0 0.0
    %1738 = vmatprep.subr.mxu0 0.0
    %1739 = vmatpush2.msra.mxu0 0.0
    %1740 = vmatprep.subr.mxu0 0.0
    %1741 = vmatpush2.msra.mxu0 0.0
    %1742 = vmatprep.mubr.f32.mxu0 0.0
    %1743 = vmatmul.mubr.f32.gmra.mxu0 %v1676
    %v1744 = vpop.f32.mrf.mxu0
    %v1745 = vadd.f32 %v1147, %v1744
    %v1746 = vpop.f32.mrf.mxu0
    %1747 = vdwg.mxu0
    %v1748 = vmul.f32 %v1745, 0.5
    %v1749 = vtanh.pop %v1748
    %v1750 = vmul.f32 %v1749, 0.5
    %v1751 = vadd.f32 %v1750, 0.5
    %v1752 = vtanh.pop %v1745
    %v1753 = vmul.f32 %v1751, %v1521
    %1755 = vrot.lane.b32.xlu0 %v1752, 32
    %v1756 = vpop.permute.xlu0 %1755
    %v1758 = vmul.f32 %v1751, %v1756
    %1760 = vrot.lane.b32.xlu0 %v1758, 32
    %v1761 = vpop.permute.xlu0 %1760
    %v1763 = vadd.f32 %v1753, %v1761
    %v1764 = vtanh.pop %v1763
    %1766 = vrot.lane.b32.xlu0 %v1764, 32
    %v1767 = vpop.permute.xlu0 %1766
    %v1769 = vmul.f32 %v1751, %v1767
    %1771 = vrot.lane.b32.xlu0 %v1769, 64
    %v1772 = vpop.permute.xlu0 %1771
    %1775 = vrot.lane.b32.xlu0 %v1631, 96
    %v1776 = vpop.permute.xlu0 %1775
    %v1778 = vsel %vm1276, %v1772, %v1776
    %v1780 = vsel %vm243, %v1778, 0
    %1782 = vmatprep.subr.mxu0 0.0
    %1783 = vmatpush1.msra.mxu0 0.0
    %1784 = vmatprep.subr.mxu0 0.0
    %1785 = vmatpush1.msra.mxu0 0.0
    %1786 = vmatprep.subr.mxu0 0.0
    %1787 = vmatpush1.msra.mxu0 0.0
    %1788 = vmatprep.subr.mxu0 0.0
    %1789 = vmatpush1.msra.mxu0 0.0
    %1790 = vmatprep.subr.mxu0 0.0
    %1791 = vmatpush1.msra.mxu0 0.0
    %1792 = vmatprep.subr.mxu0 0.0
    %1793 = vmatpush1.msra.mxu0 0.0
    %1794 = vmatprep.subr.mxu0 0.0
    %1795 = vmatpush1.msra.mxu0 0.0
    %1796 = vmatprep.subr.mxu0 0.0
    %1797 = vmatpush1.msra.mxu0 0.0
    %1798 = vmatprep.subr.mxu0 0.0
    %1799 = vmatpush1.msra.mxu0 %v1155
    %1800 = vmatprep.subr.mxu0 0.0
    %1801 = vmatpush1.msra.mxu0 %v1154
    %1802 = vmatprep.subr.mxu0 0.0
    %1803 = vmatpush1.msra.mxu0 %v1153
    %1804 = vmatprep.subr.mxu0 0.0
    %1805 = vmatpush1.msra.mxu0 %v1152
    %1806 = vmatprep.subr.mxu0 0.0
    %1807 = vmatpush1.msra.mxu0 %v1151
    %1808 = vmatprep.subr.mxu0 0.0
    %1809 = vmatpush1.msra.mxu0 %v1150
    %1810 = vmatprep.subr.mxu0 0.0
    %1811 = vmatpush1.msra.mxu0 %v1149
    %1812 = vmatprep.subr.mxu0 0.0
    %1813 = vmatpush1.msra.mxu0 %v1148
    %1814 = vmatprep.subr.mxu0 0.0
    %1815 = vmatpush2.msra.mxu0 0.0
    %1816 = vmatprep.subr.mxu0 0.0
    %1817 = vmatpush2.msra.mxu0 0.0
    %1818 = vmatprep.subr.mxu0 0.0
    %1819 = vmatpush2.msra.mxu0 0.0
    %1820 = vmatprep.subr.mxu0 0.0
    %1821 = vmatpush2.msra.mxu0 0.0
    %1822 = vmatprep.subr.mxu0 0.0
    %1823 = vmatpush2.msra.mxu0 0.0
    %1824 = vmatprep.subr.mxu0 0.0
    %1825 = vmatpush2.msra.mxu0 0.0
    %1826 = vmatprep.subr.mxu0 0.0
    %1827 = vmatpush2.msra.mxu0 0.0
    %1828 = vmatprep.subr.mxu0 0.0
    %1829 = vmatpush2.msra.mxu0 0.0
    %1830 = vmatprep.subr.mxu0 0.0
    %1831 = vmatpush2.msra.mxu0 0.0
    %1832 = vmatprep.subr.mxu0 0.0
    %1833 = vmatpush2.msra.mxu0 0.0
    %1834 = vmatprep.subr.mxu0 0.0
    %1835 = vmatpush2.msra.mxu0 0.0
    %1836 = vmatprep.subr.mxu0 0.0
    %1837 = vmatpush2.msra.mxu0 0.0
    %1838 = vmatprep.subr.mxu0 0.0
    %1839 = vmatpush2.msra.mxu0 0.0
    %1840 = vmatprep.subr.mxu0 0.0
    %1841 = vmatpush2.msra.mxu0 0.0
    %1842 = vmatprep.subr.mxu0 0.0
    %1843 = vmatpush2.msra.mxu0 0.0
    %1844 = vmatprep.subr.mxu0 0.0
    %1845 = vmatpush2.msra.mxu0 0.0
    %1846 = vmatprep.mubr.f32.mxu0 0.0
    %1847 = vmatmul.mubr.f32.gmra.mxu0 %v1780
    %v1848 = vpop.f32.mrf.mxu0
    %v1849 = vadd.f32 %v1156, %v1848
    %v1850 = vpop.f32.mrf.mxu0
    %1851 = vdwg.mxu0
    %v1852 = vmul.f32 %v1849, 0.5
    %v1853 = vtanh.pop %v1852
    %v1854 = vmul.f32 %v1853, 0.5
    %v1855 = vadd.f32 %v1854, 0.5
    %v1856 = vtanh.pop %v1849
    %v1857 = vmul.f32 %v1855, %v1625
    %1859 = vrot.lane.b32.xlu0 %v1856, 32
    %v1860 = vpop.permute.xlu0 %1859
    %v1862 = vmul.f32 %v1855, %v1860
    %1864 = vrot.lane.b32.xlu0 %v1862, 32
    %v1865 = vpop.permute.xlu0 %1864
    %v1867 = vadd.f32 %v1857, %v1865
    %v1868 = vtanh.pop %v1867
    %1870 = vrot.lane.b32.xlu0 %v1868, 32
    %v1871 = vpop.permute.xlu0 %1870
    %v1873 = vmul.f32 %v1855, %v1871
    %v1874 = vmul.f32 %v1873, %v1378
    %1876 = vrot.lane.b32.xlu0 %v1874, 64
    %v1877 = vpop.permute.xlu0 %1876
    %v1879 = vsel %vm1385, %v1877, 0.0
    %1880 = vadd.xlane.f32.xlu0 %v1879
    %v1881 = vpop.xlane.xlu0 %1880
    %v1882 = vadd.f32 %v1881, %v1157
    %1884 = vset.pattern.permute.xlu0 32
    %1885 = vperm.xlu0 %1884, %v1882
    %v1886 = vpop.permute.xlu0 %1885
    %v1888 = vsel %vm1418, %v1886, 0.0
    %v1889 = vadd.f32 %v1647, %v1888
    %1890 = vrot.lane.b32.xlu0 %v1882, 96
    %v1891 = vpop.permute.xlu0 %1890
    %v1893 = vsub.f32 %v1670, %v1891
    %1895 = vrot.lane.b32.xlu0 %v1893, 1
    %v1896 = vpop.permute.xlu0 %1895
    %v1898 = vsub.f32 %v1670, %v1896
    %v1899 = vsel %vm1390, %v1886, 0.0
    %1900 = vset.pattern.permute.xlu0 0
    %1901 = vperm.xlu0 %1900, %v1893
    %v1902 = vpop.permute.xlu0 %1901
    %v1904 = vsel %vm1408, %v1902, 0.0
    %v1905 = vadd.f32 %v1899, %v1904
    %1907 = vset.pattern.permute.xlu0 1
    %1908 = vperm.xlu0 %1907, %v1898
    %v1909 = vpop.permute.xlu0 %1908
    %v1911 = vsel %vm1418, %v1909, 0.0
    %v1912 = vadd.f32 %v1905, %v1911
    %1913 = vrot.lane.b32.xlu0 %v1769, 68
    %v1914 = vpop.permute.xlu0 %1913
    %v1916 = vsel %vm50, %v1912, %v1914
    %v1918 = vsel %vm1167, %v1916, 0
    %1920 = vmatprep.subr.mxu0 0.0
    %1921 = vmatpush1.msra.mxu0 0.0
    %1922 = vmatprep.subr.mxu0 0.0
    %1923 = vmatpush1.msra.mxu0 0.0
    %1924 = vmatprep.subr.mxu0 0.0
    %1925 = vmatpush1.msra.mxu0 0.0
    %1926 = vmatprep.subr.mxu0 0.0
    %1927 = vmatpush1.msra.mxu0 0.0
    %1928 = vmatprep.subr.mxu0 0.0
    %1929 = vmatpush1.msra.mxu0 0.0
    %1930 = vmatprep.subr.mxu0 0.0
    %1931 = vmatpush1.msra.mxu0 0.0
    %1932 = vmatprep.subr.mxu0 0.0
    %1933 = vmatpush1.msra.mxu0 0.0
    %1934 = vmatprep.subr.mxu0 0.0
    %1935 = vmatpush1.msra.mxu0 0.0
    %1936 = vmatprep.subr.mxu0 0.0
    %1937 = vmatpush1.msra.mxu0 0.0
    %1938 = vmatprep.subr.mxu0 0.0
    %1939 = vmatpush1.msra.mxu0 0.0
    %1940 = vmatprep.subr.mxu0 0.0
    %1941 = vmatpush1.msra.mxu0 0.0
    %1942 = vmatprep.subr.mxu0 0.0
    %1943 = vmatpush1.msra.mxu0 %v1171
    %1944 = vmatprep.subr.mxu0 0.0
    %1945 = vmatpush1.msra.mxu0 %v1145
    %1946 = vmatprep.subr.mxu0 0.0
    %1947 = vmatpush1.msra.mxu0 %v1144
    %1948 = vmatprep.subr.mxu0 0.0
    %1949 = vmatpush1.msra.mxu0 %v1143
    %1950 = vmatprep.subr.mxu0 0.0
    %1951 = vmatpush1.msra.mxu0 %v1142
    %1952 = vmatprep.subr.mxu0 0.0
    %1953 = vmatpush2.msra.mxu0 0.0
    %1954 = vmatprep.subr.mxu0 0.0
    %1955 = vmatpush2.msra.mxu0 0.0
    %1956 = vmatprep.subr.mxu0 0.0
    %1957 = vmatpush2.msra.mxu0 0.0
    %1958 = vmatprep.subr.mxu0 0.0
    %1959 = vmatpush2.msra.mxu0 0.0
    %1960 = vmatprep.subr.mxu0 0.0
    %1961 = vmatpush2.msra.mxu0 0.0
    %1962 = vmatprep.subr.mxu0 0.0
    %1963 = vmatpush2.msra.mxu0 0.0
    %1964 = vmatprep.subr.mxu0 0.0
    %1965 = vmatpush2.msra.mxu0 0.0
    %1966 = vmatprep.subr.mxu0 0.0
    %1967 = vmatpush2.msra.mxu0 0.0
    %1968 = vmatprep.subr.mxu0 0.0
    %1969 = vmatpush2.msra.mxu0 0.0
    %1970 = vmatprep.subr.mxu0 0.0
    %1971 = vmatpush2.msra.mxu0 0.0
    %1972 = vmatprep.subr.mxu0 0.0
    %1973 = vmatpush2.msra.mxu0 0.0
    %1974 = vmatprep.subr.mxu0 0.0
    %1975 = vmatpush2.msra.mxu0 0.0
    %1976 = vmatprep.subr.mxu0 0.0
    %1977 = vmatpush2.msra.mxu0 0.0
    %1978 = vmatprep.subr.mxu0 0.0
    %1979 = vmatpush2.msra.mxu0 0.0
    %1980 = vmatprep.subr.mxu0 0.0
    %1981 = vmatpush2.msra.mxu0 0.0
    %1982 = vmatprep.subr.mxu0 0.0
    %1983 = vmatpush2.msra.mxu0 0.0
    %1984 = vmatprep.mubr.f32.mxu0 0.0
    %1985 = vmatmul.mubr.f32.gmra.mxu0 %v1918
    %v1986 = vpop.f32.mrf.mxu0
    %v1987 = vadd.f32 %v1147, %v1986
    %v1988 = vpop.f32.mrf.mxu0
    %1989 = vdwg.mxu0
    %v1990 = vmul.f32 %v1987, 0.5
    %v1991 = vtanh.pop %v1990
    %v1992 = vmul.f32 %v1991, 0.5
    %v1993 = vadd.f32 %v1992, 0.5
    %v1994 = vtanh.pop %v1987
    %v1995 = vmul.f32 %v1993, %v1763
    %1997 = vrot.lane.b32.xlu0 %v1994, 32
    %v1998 = vpop.permute.xlu0 %1997
    %v2000 = vmul.f32 %v1993, %v1998
    %2002 = vrot.lane.b32.xlu0 %v2000, 32
    %v2003 = vpop.permute.xlu0 %2002
    %v2005 = vadd.f32 %v1995, %v2003
    %v2006 = vtanh.pop %v2005
    %2008 = vrot.lane.b32.xlu0 %v2006, 32
    %v2009 = vpop.permute.xlu0 %2008
    %v2011 = vmul.f32 %v1993, %v2009
    %2013 = vrot.lane.b32.xlu0 %v2011, 64
    %v2014 = vpop.permute.xlu0 %2013
    %2017 = vrot.lane.b32.xlu0 %v1873, 96
    %v2018 = vpop.permute.xlu0 %2017
    %v2020 = vsel %vm1276, %v2014, %v2018
    %v2022 = vsel %vm243, %v2020, 0
    %2024 = vmatprep.subr.mxu0 0.0
    %2025 = vmatpush1.msra.mxu0 0.0
    %2026 = vmatprep.subr.mxu0 0.0
    %2027 = vmatpush1.msra.mxu0 0.0
    %2028 = vmatprep.subr.mxu0 0.0
    %2029 = vmatpush1.msra.mxu0 0.0
    %2030 = vmatprep.subr.mxu0 0.0
    %2031 = vmatpush1.msra.mxu0 0.0
    %2032 = vmatprep.subr.mxu0 0.0
    %2033 = vmatpush1.msra.mxu0 0.0
    %2034 = vmatprep.subr.mxu0 0.0
    %2035 = vmatpush1.msra.mxu0 0.0
    %2036 = vmatprep.subr.mxu0 0.0
    %2037 = vmatpush1.msra.mxu0 0.0
    %2038 = vmatprep.subr.mxu0 0.0
    %2039 = vmatpush1.msra.mxu0 0.0
    %2040 = vmatprep.subr.mxu0 0.0
    %2041 = vmatpush1.msra.mxu0 %v1155
    %2042 = vmatprep.subr.mxu0 0.0
    %2043 = vmatpush1.msra.mxu0 %v1154
    %2044 = vmatprep.subr.mxu0 0.0
    %2045 = vmatpush1.msra.mxu0 %v1153
    %2046 = vmatprep.subr.mxu0 0.0
    %2047 = vmatpush1.msra.mxu0 %v1152
    %2048 = vmatprep.subr.mxu0 0.0
    %2049 = vmatpush1.msra.mxu0 %v1151
    %2050 = vmatprep.subr.mxu0 0.0
    %2051 = vmatpush1.msra.mxu0 %v1150
    %2052 = vmatprep.subr.mxu0 0.0
    %2053 = vmatpush1.msra.mxu0 %v1149
    %2054 = vmatprep.subr.mxu0 0.0
    %2055 = vmatpush1.msra.mxu0 %v1148
    %2056 = vmatprep.subr.mxu0 0.0
    %2057 = vmatpush2.msra.mxu0 0.0
    %2058 = vmatprep.subr.mxu0 0.0
    %2059 = vmatpush2.msra.mxu0 0.0
    %2060 = vmatprep.subr.mxu0 0.0
    %2061 = vmatpush2.msra.mxu0 0.0
    %2062 = vmatprep.subr.mxu0 0.0
    %2063 = vmatpush2.msra.mxu0 0.0
    %2064 = vmatprep.subr.mxu0 0.0
    %2065 = vmatpush2.msra.mxu0 0.0
    %2066 = vmatprep.subr.mxu0 0.0
    %2067 = vmatpush2.msra.mxu0 0.0
    %2068 = vmatprep.subr.mxu0 0.0
    %2069 = vmatpush2.msra.mxu0 0.0
    %2070 = vmatprep.subr.mxu0 0.0
    %2071 = vmatpush2.msra.mxu0 0.0
    %2072 = vmatprep.subr.mxu0 0.0
    %2073 = vmatpush2.msra.mxu0 0.0
    %2074 = vmatprep.subr.mxu0 0.0
    %2075 = vmatpush2.msra.mxu0 0.0
    %2076 = vmatprep.subr.mxu0 0.0
    %2077 = vmatpush2.msra.mxu0 0.0
    %2078 = vmatprep.subr.mxu0 0.0
    %2079 = vmatpush2.msra.mxu0 0.0
    %2080 = vmatprep.subr.mxu0 0.0
    %2081 = vmatpush2.msra.mxu0 0.0
    %2082 = vmatprep.subr.mxu0 0.0
    %2083 = vmatpush2.msra.mxu0 0.0
    %2084 = vmatprep.subr.mxu0 0.0
    %2085 = vmatpush2.msra.mxu0 0.0
    %2086 = vmatprep.subr.mxu0 0.0
    %2087 = vmatpush2.msra.mxu0 0.0
    %2088 = vmatprep.mubr.f32.mxu0 0.0
    %2089 = vmatmul.mubr.f32.gmra.mxu0 %v2022
    %v2090 = vpop.f32.mrf.mxu0
    %v2091 = vadd.f32 %v1156, %v2090
    %v2092 = vpop.f32.mrf.mxu0
    %2093 = vdwg.mxu0
    %v2094 = vmul.f32 %v2091, 0.5
    %v2095 = vtanh.pop %v2094
    %v2096 = vmul.f32 %v2095, 0.5
    %v2097 = vadd.f32 %v2096, 0.5
    %v2098 = vtanh.pop %v2091
    %v2099 = vmul.f32 %v2097, %v1867
    %2101 = vrot.lane.b32.xlu0 %v2098, 32
    %v2102 = vpop.permute.xlu0 %2101
    %v2104 = vmul.f32 %v2097, %v2102
    %2106 = vrot.lane.b32.xlu0 %v2104, 32
    %v2107 = vpop.permute.xlu0 %2106
    %v2109 = vadd.f32 %v2099, %v2107
    %v2110 = vtanh.pop %v2109
    %2112 = vrot.lane.b32.xlu0 %v2110, 32
    %v2113 = vpop.permute.xlu0 %2112
    %v2115 = vmul.f32 %v2097, %v2113
    %v2116 = vmul.f32 %v2115, %v1378
    %2118 = vrot.lane.b32.xlu0 %v2116, 64
    %v2119 = vpop.permute.xlu0 %2118
    %v2121 = vsel %vm1385, %v2119, 0.0
    %2122 = vadd.xlane.f32.xlu0 %v2121
    %v2123 = vpop.xlane.xlu0 %2122
    %v2124 = vadd.f32 %v2123, %v1157
    %vm2125 = vcmp.eq.s32.totalorder %v1159, 3
    %2127 = vset.pattern.permute.xlu0 32
    %2128 = vperm.xlu0 %2127, %v2124
    %v2129 = vpop.permute.xlu0 %2128
    %v2131 = vsel %vm2125, %v2129, 0.0
    %v2132 = vadd.f32 %v1889, %v2131
    %vm2133 = vcmask 25600
    %2134 = vst.msk [vmem:[#allocation5] sm:$0x3] %vm2133, %v2132
    // Predicated region
    $region14: #{forward.1} parent=1 // pred_check
      _
    $region15: #{forward.1} parent=1 // pred_check_branch
      %2136 = sbr.rel (0) target = $region17
    $region16: #{forward.1} parent=1 // pred_region
      %s2138 = ssub.s32 32, 32
      %2139 = vsyncadd [#allocation4], %s2138
      %s2141 = sshll.u32 [#allocation5], 4
      %s2142 = int_to_ptr.vmem [resolvable:$true] %s2141
      %2144 = dma.vmem_to_hbm [thread:$0]  %s2142, 32, %s2, [#allocation4]
    $region17: #{forward.1} parent=1 // pred_fallthru
      _
    // Predicated region
    $region18: #{forward.1} parent=1 // pred_check
      _
    $region19: #{forward.1} parent=1 // pred_check_branch
      %2146 = sbr.rel (0) target = $region21
    $region20: #{forward.1} parent=1 // pred_region
      %2147 = dma.done [#allocation4], 32
    $region21: #{forward.1} parent=1 // pred_fallthru
      _
    %2148 = vsyncpa [#allocation3], 1
    %2149 = vsyncpa [#allocation4], 1

</llo_original>
